<compile_context>
chip_gen: v5e
topology: v5e:2x2
jax: 0.10.0
libtpu: 0.0.40
codegen_flags: <defaults>
</compile_context>

<pallas_src>
import functools

import jax
import jax.numpy as jnp
from jax.experimental import pallas as pl
from jax.experimental.pallas import tpu as pltpu

EPS = 1e-4  # reltransformer LayerNorm eps


# ---------------------------------------------------------------------------
# Pallas kernel: one (batch, T-tile) grid step runs ALL layers + final proj.
# ---------------------------------------------------------------------------
def _fused_kernel(K, P, H, L, TT, HL, N, cdt,
                  x_ref, m_ref, wf0_ref, wfh_ref, bf_ref,
                  g1_ref, be1_ref, g2_ref, be2_ref, wz_ref, bz_ref,
                  wp_ref, bp_ref, o_ref):
    """Shapes (per block):
    x_ref  : (1, T_pad, Cin)   padded sequence, resident across the t axis
    m_ref  : (1, T_pad, 1)     padded mask (zero outside the valid range)
    wf0    : (K, Cin, 2H)      layer-0 conv weights, [main || controlnet] on dim -1
    wfh    : (L-1, K, H, 2H)   hidden-layer conv weights
    bf     : (L, 1, 2H)        conv biases
    g1/be1 : (L, 1, H)         main-branch LayerNorm affine
    g2/be2 : (L, 1, H)         controlnet-branch LayerNorm affine
    wz     : (L, H, H)         controlnet zero-conv weights,  bz : (L, 1, H)
    wp     : (H, Cout), bp : (1, Cout)   final 1x1 projection
    o_ref  : (1, TT, Cout)     output tile (central rows of the halo window)
    """
    t = pl.program_id(1)
    start = pl.multiple_of(t * TT, 8)

    # Halo window: rows [t*TT, t*TT + N) of the padded sequence.
    xw = x_ref[0, pl.ds(start, N), :].astype(jnp.float32)     # (N, Cin)
    mw = m_ref[0, pl.ds(start, N), :].astype(jnp.float32)     # (N, 1)

    def ln(h):  # LayerNorm over channels, biased variance; affine applied outside
        mu = jnp.mean(h, axis=-1, keepdims=True)
        var = jnp.mean(jnp.square(h - mu), axis=-1, keepdims=True)
        return (h - mu) * jax.lax.rsqrt(var + EPS)

    def layer(xin, tap_w, li):
        """xin: (N, Ci) f32;  tap_w(k) -> (Ci, 2H) conv weights;  li: layer index."""
        xm = xin * mw                                          # masked conv input (f32)
        acc = jnp.zeros((N, 2 * H), jnp.float32)
        for k in range(K):                                     # K-tap conv: roll + matmul
            sh = xm if k == P else pltpu.roll(xm, shift=(P - k) % N, axis=0)
            acc = acc + jnp.dot(sh.astype(cdt), tap_w(k),
                                preferred_element_type=jnp.float32)
        h = acc + bf_ref[li]                                   # (N, 2H)
        a1 = jnp.maximum(ln(h[:, :H]) * g1_ref[li] + be1_ref[li], 0.0)
        a2 = jnp.maximum(ln(h[:, H:]) * g2_ref[li] + be2_ref[li], 0.0)
        # main branch + controlnet zero-conv; the old identity half of the fused
        # matmul is now a free VPU add.
        return a1 + jnp.dot(a2.astype(cdt), wz_ref[li],
                            preferred_element_type=jnp.float32) + bz_ref[li]

    # layer 0 (Ci = in_channels)
    xcur = layer(xw, lambda k: wf0_ref[k], 0)

    # hidden layers (Ci = H): fori_loop over the stacked weights
    def body(l, xc):
        w_l = wfh_ref[l]                                       # (K, H, 2H)
        return layer(xc, lambda k: w_l[k], l + 1)

    xcur = jax.lax.fori_loop(0, L - 1, body, xcur)

    # out = (x_org + proj(x)) * mask on the central TT rows of the window
    xc = xcur[HL:HL + TT, :]
    y = jnp.dot(xc.astype(cdt), wp_ref[...],
                preferred_element_type=jnp.float32) + bp_ref[...]
    x_org = xw[HL:HL + TT, :]
    mc = mw[HL:HL + TT, :]
    o_ref[0] = ((x_org + y) * mc).astype(o_ref.dtype)


# ---------------------------------------------------------------------------
# Wrapper
# ---------------------------------------------------------------------------
def _round_up(v, m):
    return (v + m - 1) // m * m


def _pack_params(params, compute_dtype):
    layers = params["layers"]

    def fuse_conv(layer):  # (K, Ci, H) || (K, Ci, H) -> (K, Ci, 2H)
        return jnp.concatenate([layer["w1"], layer["w2"]], axis=-1)

    wf0 = fuse_conv(layers[0]).astype(compute_dtype)                       # (K, Cin, 2H)
    wfh = jnp.stack([fuse_conv(l) for l in layers[1:]]).astype(compute_dtype)  # (L-1,K,H,2H)
    bf = jnp.stack([jnp.concatenate([l["b1"], l["b2"]], axis=-1)
                    for l in layers])                                      # (L, 1, 2H) f32
    g1 = jnp.stack([l["g1"] for l in layers])                              # (L, 1, H)
    be1 = jnp.stack([l["be1"] for l in layers])
    g2 = jnp.stack([l["g2"] for l in layers])
    be2 = jnp.stack([l["be2"] for l in layers])
    wz = jnp.stack([l["wz"] for l in layers]).astype(compute_dtype)        # (L, H, H)
    bz = jnp.stack([l["bz"] for l in layers])                              # (L, 1, H)
    wp = params["wp"].astype(compute_dtype)                                # (H, Cout)
    bp = params["bp"]                                                      # (1, Cout)
    return wf0, wfh, bf, g1, be1, g2, be2, wz, bz, wp, bp


def conv_relu_norm_forward(x, x_mask, params, *, t_tile=512,
                           compute_dtype=jnp.bfloat16):
    """x: (B, T, Cin), x_mask: (B, T, 1).  Returns (B, T, Cout) with Cout == Cin."""
    B, T, Cin = x.shape
    K = params["kernel_size"]
    P = K // 2
    assert K % 2 == 1, "padding=kernel_size//2 only matches PyTorch for odd K"
    H = params["hidden_channels"]
    L = params["n_layers"]
    assert L > 1 and len(params["layers"]) == L
    Cout = params["wp"].shape[-1]
    assert Cout == Cin, "x_org residual requires out_channels == in_channels"

    packed = _pack_params(params, compute_dtype)

    # --- T tiling with an n_layers*P halo (sized so transients fit scoped VMEM
    #     on v5e/v6e and v7x's 64 MiB) ---
    TT = min(_round_up(t_tile, 8), _round_up(T, 8))
    n_t = (T + TT - 1) // TT
    T_round = n_t * TT
    HL = L * P                                  # left halo (receptive field of L convs)
    N = _round_up(TT + 2 * HL, 8)               # in-kernel window length (8-row aligned)
    T_pad = (n_t - 1) * TT + N                  # padded sequence length

    x_pad = jnp.pad(x, ((0, 0), (HL, T_pad - HL - T), (0, 0)))
    m_pad = jnp.pad(x_mask.astype(x.dtype), ((0, 0), (HL, T_pad - HL - T), (0, 0)))

    # explicit VMEM budget (review: scoped default is only 16/32 MiB)
    weight_bytes = sum(int(a.size) * a.dtype.itemsize for a in packed)
    act_bytes = N * (Cin + 1 + 8 * H) * 4                     # per-tile transients (f32)
    io_bytes = 2 * (T_pad * (Cin + 1) + TT * Cout) * 4        # double-buffered x/mask/out
    vmem_limit = int(min(max((2 * act_bytes + io_bytes + 2 * weight_bytes) * 1.5,
                             16 * 1024 * 1024), 64 * 1024 * 1024))

    ins = (x_pad, m_pad) + packed

    def const_spec(a):  # full-array, constant-index block (weights)
        nd = a.ndim
        return pl.BlockSpec(a.shape, lambda b, t, _nd=nd: (0,) * _nd)

    in_specs = [pl.BlockSpec((1, T_pad, Cin), lambda b, t: (b, 0, 0)),
                pl.BlockSpec((1, T_pad, 1), lambda b, t: (b, 0, 0))] + \
               [const_spec(a) for a in packed]

    out = pl.pallas_call(
        functools.partial(_fused_kernel, K, P, H, L, TT, HL, N, compute_dtype),
        out_shape=jax.ShapeDtypeStruct((B, T_round, Cout), x.dtype),
        grid_spec=pltpu.PrefetchScalarGridSpec(
            num_scalar_prefetch=0,
            grid=(B, n_t),
            in_specs=in_specs,
            out_specs=pl.BlockSpec((1, TT, Cout), lambda b, t: (b, t, 0)),
        ),
        compiler_params=pltpu.CompilerParams(
            dimension_semantics=("parallel", "parallel"),
            vmem_limit_bytes=vmem_limit),
    )(*ins)
    return out[:, :T, :]


# ---------------------------------------------------------------------------
# Pure-JAX reference (same math, no Pallas) for correctness check
# ---------------------------------------------------------------------------
def reference_forward(x, x_mask, params):
    K = params["kernel_size"]
    P = K // 2
    x_org = x

    def conv(xp, w, b):  # xp: (B, T+2P, Ci), w: (K, Ci, Co)
        T = xp.shape[1] - 2 * P
        acc = b[None, None, :]
        for k in range(K):
            acc = acc + jnp.einsum("bti,io->bto", xp[:, k:k + T, :], w[k])
        return acc

    def layer_norm(h, g, be):
        mean = jnp.mean(h, axis=-1, keepdims=True)
        var = jnp.mean((h - mean) ** 2, axis=-1, keepdims=True)
        return (h - mean) * jax.lax.rsqrt(var + EPS) * g + be

    for layer in params["layers"]:
        xm = x * x_mask
        xp = jnp.pad(xm, ((0, 0), (P, P), (0, 0)))
        h1 = jnp.maximum(layer_norm(conv(xp, layer["w1"], layer["b1"][0]),
                                    layer["g1"][0], layer["be1"][0]), 0.0)
        h2 = jnp.maximum(layer_norm(conv(xp, layer["w2"], layer["b2"][0]),
                                    layer["g2"][0], layer["be2"][0]), 0.0)
        h2 = jnp.einsum("bth,ho->bto", h2, layer["wz"]) + layer["bz"][0]
        x = h1 + h2
    out = x_org + jnp.einsum("bth,ho->bto", x, params["wp"]) + params["bp"][0]
    return out * x_mask


# ---------------------------------------------------------------------------
# Parameter init (deterministic, synthetic)
# ---------------------------------------------------------------------------
def init_params(key, in_channels, hidden_channels, out_channels,
                kernel_size, n_layers):
    # NOTE: the PyTorch __init__ zero-initializes `proj` and the controlnet
    # zero-convs; here we use small deterministic non-zero values so the full
    # compute path is exercised (forward semantics are identical).
    def nxt():
        nonlocal key
        key, sub = jax.random.split(key)
        return sub

    layers = []
    ci = in_channels
    for _ in range(n_layers):
        layers.append(dict(
            w1=0.1 * jax.random.normal(nxt(), (kernel_size, ci, hidden_channels), jnp.float32),
            b1=0.1 * jax.random.normal(nxt(), (1, hidden_channels), jnp.float32),
            g1=jnp.ones((1, hidden_channels), jnp.float32),
            be1=jnp.zeros((1, hidden_channels), jnp.float32),
            w2=0.1 * jax.random.normal(nxt(), (kernel_size, ci, hidden_channels), jnp.float32),
            b2=0.1 * jax.random.normal(nxt(), (1, hidden_channels), jnp.float32),
            g2=jnp.ones((1, hidden_channels), jnp.float32),
            be2=jnp.zeros((1, hidden_channels), jnp.float32),
            wz=0.05 * jax.random.normal(nxt(), (hidden_channels, hidden_channels), jnp.float32),
            bz=0.05 * jax.random.normal(nxt(), (1, hidden_channels), jnp.float32),
        ))
        ci = hidden_channels
    return dict(
        kernel_size=kernel_size,
        hidden_channels=hidden_channels,
        n_layers=n_layers,
        layers=layers,
        wp=0.05 * jax.random.normal(nxt(), (hidden_channels, out_channels), jnp.float32),
        bp=0.05 * jax.random.normal(nxt(), (1, out_channels), jnp.float32),
    )


if __name__ == "__main__":
    B, T = 2, 16
    in_channels = 4
    hidden_channels = 32
    out_channels = 4          # must equal in_channels for the x_org residual
    kernel_size = 3
    n_layers = 2              # module asserts n_layers > 1
    # p_dropout = 0.1         # inference: dropout is identity

    key = jax.random.PRNGKey(0)
    kx, kp = jax.random.split(key)
    x = jax.random.normal(kx, (B, T, in_channels), jnp.float32)

    # mask out the tail of sequence 1 (valid lengths 16 and 10)
    lengths = jnp.array([16, 10])
    x_mask = (jnp.arange(T)[None, :] < lengths[:, None]).astype(jnp.float32)[..., None]

    params = init_params(kp, in_channels, hidden_channels, out_channels,
                         kernel_size, n_layers)

    ref = jax.block_until_ready(reference_forward(x, x_mask, params))

    # (1) f32 compute, multi-tile path: t_tile=8 -> 2 T-tiles with halo windows.
    out_f32 = conv_relu_norm_forward(x, x_mask, params,
                                     t_tile=8, compute_dtype=jnp.float32)
    out_f32 = jax.block_until_ready(out_f32)
    assert out_f32.shape == (B, T, out_channels)
    assert jnp.allclose(out_f32, ref, rtol=1e-3, atol=1e-3), "f32 mismatch vs reference"

    # (2) bf16-matmul path (f32 accumulation / LayerNorm), default single tile.
    out_bf16 = conv_relu_norm_forward(x, x_mask, params,
                                      compute_dtype=jnp.bfloat16)
    out_bf16 = jax.block_until_ready(out_bf16)
    assert out_bf16.shape == (B, T, out_channels)
    assert jnp.allclose(out_bf16, ref, rtol=5e-2, atol=5e-2), "bf16 mismatch vs reference"

    print("KERNEL_OK")
</pallas_src>

<mosaic_0001>
module attributes {stable_mosaic.version = 11 : i64} {
  func.func @_fused_kernel(%arg0: i32, %arg1: i32, %arg2: memref<1x24x4xf32, #tpu.memory_space<vmem>>, %arg3: memref<1x24x1xf32, #tpu.memory_space<vmem>>, %arg4: memref<3x4x64xf32, #tpu.memory_space<vmem>>, %arg5: memref<1x3x32x64xf32, #tpu.memory_space<vmem>>, %arg6: memref<2x1x64xf32, #tpu.memory_space<vmem>>, %arg7: memref<2x1x32xf32, #tpu.memory_space<vmem>>, %arg8: memref<2x1x32xf32, #tpu.memory_space<vmem>>, %arg9: memref<2x1x32xf32, #tpu.memory_space<vmem>>, %arg10: memref<2x1x32xf32, #tpu.memory_space<vmem>>, %arg11: memref<2x32x32xf32, #tpu.memory_space<vmem>>, %arg12: memref<2x1x32xf32, #tpu.memory_space<vmem>>, %arg13: memref<32x4xf32, #tpu.memory_space<vmem>>, %arg14: memref<1x4xf32, #tpu.memory_space<vmem>>, %arg15: memref<1x8x4xf32, #tpu.memory_space<vmem>>) attributes {dimension_semantics = [#tpu.dimension_semantics<parallel>, #tpu.dimension_semantics<parallel>], iteration_bounds = array<i64: 2, 2>, scalar_prefetch = 0 : i64, scratch_operands = 0 : i64, tpu.core_type = #tpu.core_type<tc>, window_params = [{transform_indices = @transform_0, window_bounds = array<i64: 1, 24, 4>}, {transform_indices = @transform_1, window_bounds = array<i64: 1, 24, 1>}, {pipeline_mode = #tpu.pipeline_mode<synchronous>, transform_indices = @transform_2, window_bounds = array<i64: 3, 4, 64>}, {pipeline_mode = #tpu.pipeline_mode<synchronous>, transform_indices = @transform_3, window_bounds = array<i64: 1, 3, 32, 64>}, {pipeline_mode = #tpu.pipeline_mode<synchronous>, transform_indices = @transform_4, window_bounds = array<i64: 2, 1, 64>}, {pipeline_mode = #tpu.pipeline_mode<synchronous>, transform_indices = @transform_5, window_bounds = array<i64: 2, 1, 32>}, {pipeline_mode = #tpu.pipeline_mode<synchronous>, transform_indices = @transform_6, window_bounds = array<i64: 2, 1, 32>}, {pipeline_mode = #tpu.pipeline_mode<synchronous>, transform_indices = @transform_7, window_bounds = array<i64: 2, 1, 32>}, {pipeline_mode = #tpu.pipeline_mode<synchronous>, transform_indices = @transform_8, window_bounds = array<i64: 2, 1, 32>}, {pipeline_mode = #tpu.pipeline_mode<synchronous>, transform_indices = @transform_9, window_bounds = array<i64: 2, 32, 32>}, {pipeline_mode = #tpu.pipeline_mode<synchronous>, transform_indices = @transform_10, window_bounds = array<i64: 2, 1, 32>}, {pipeline_mode = #tpu.pipeline_mode<synchronous>, transform_indices = @transform_11, window_bounds = array<i64: 32, 4>}, {pipeline_mode = #tpu.pipeline_mode<synchronous>, transform_indices = @transform_12, window_bounds = array<i64: 1, 4>}, {transform_indices = @transform_13, window_bounds = array<i64: 1, 8, 4>}]} {
    %c8_i32 = arith.constant 8 : i32
    %0 = arith.muli %arg1, %c8_i32 : i32
    %1 = tpu.assume_multiple %0, 8 : i32
    %c0 = arith.constant 0 : index
    %2 = arith.index_cast %1 : i32 to index
    %c0_0 = arith.constant 0 : index
    %3 = vector.load %arg2[%c0, %2, %c0_0] : memref<1x24x4xf32, #tpu.memory_space<vmem>>, vector<1x16x4xf32>
    %4 = vector.shape_cast %3 : vector<1x16x4xf32> to vector<16x4xf32>
    %c0_1 = arith.constant 0 : index
    %5 = arith.index_cast %1 : i32 to index
    %c0_2 = arith.constant 0 : index
    %6 = vector.load %arg3[%c0_1, %5, %c0_2] : memref<1x24x1xf32, #tpu.memory_space<vmem>>, vector<1x16x1xf32>
    %7 = vector.shape_cast %6 : vector<1x16x1xf32> to vector<16x1xf32>
    %8 = vector.broadcast %7 : vector<16x1xf32> to vector<16x4xf32>
    %9 = arith.mulf %4, %8 : vector<16x4xf32>
    %cst = arith.constant 0.000000e+00 : f32
    %10 = vector.broadcast %cst : f32 to vector<16x64xf32>
    %c1_i32 = arith.constant 1 : i32
    %11 = tpu.dynamic_rotate %9 by %c1_i32 dim 0 : vector<16x4xf32>, i32 -> vector<16x4xf32>
    %c0_3 = arith.constant 0 : index
    %c0_4 = arith.constant 0 : index
    %c0_5 = arith.constant 0 : index
    %12 = vector.load %arg4[%c0_3, %c0_4, %c0_5] : memref<3x4x64xf32, #tpu.memory_space<vmem>>, vector<1x4x64xf32>
    %13 = vector.shape_cast %12 : vector<1x4x64xf32> to vector<4x64xf32>
    %cst_6 = arith.constant dense<0.000000e+00> : vector<16x64xf32>
    %14 = tpu.matmul %11, %13, %cst_6 {dimension_numbers = #tpu.dot_dimension_numbers<[1], [0], [0], [1], [0, 0, 1, 1], [], []>} : vector<16x4xf32>, vector<4x64xf32>, vector<16x64xf32> -> vector<16x64xf32>
    %15 = arith.addf %10, %14 : vector<16x64xf32>
    %c1 = arith.constant 1 : index
    %c0_7 = arith.constant 0 : index
    %c0_8 = arith.constant 0 : index
    %16 = vector.load %arg4[%c1, %c0_7, %c0_8] : memref<3x4x64xf32, #tpu.memory_space<vmem>>, vector<1x4x64xf32>
    %17 = vector.shape_cast %16 : vector<1x4x64xf32> to vector<4x64xf32>
    %cst_9 = arith.constant dense<0.000000e+00> : vector<16x64xf32>
    %18 = tpu.matmul %9, %17, %cst_9 {dimension_numbers = #tpu.dot_dimension_numbers<[1], [0], [0], [1], [0, 0, 1, 1], [], []>} : vector<16x4xf32>, vector<4x64xf32>, vector<16x64xf32> -> vector<16x64xf32>
    %19 = arith.addf %15, %18 : vector<16x64xf32>
    %c15_i32 = arith.constant 15 : i32
    %20 = tpu.dynamic_rotate %9 by %c15_i32 dim 0 : vector<16x4xf32>, i32 -> vector<16x4xf32>
    %c2 = arith.constant 2 : index
    %c0_10 = arith.constant 0 : index
    %c0_11 = arith.constant 0 : index
    %21 = vector.load %arg4[%c2, %c0_10, %c0_11] : memref<3x4x64xf32, #tpu.memory_space<vmem>>, vector<1x4x64xf32>
    %22 = vector.shape_cast %21 : vector<1x4x64xf32> to vector<4x64xf32>
    %cst_12 = arith.constant dense<0.000000e+00> : vector<16x64xf32>
    %23 = tpu.matmul %20, %22, %cst_12 {dimension_numbers = #tpu.dot_dimension_numbers<[1], [0], [0], [1], [0, 0, 1, 1], [], []>} : vector<16x4xf32>, vector<4x64xf32>, vector<16x64xf32> -> vector<16x64xf32>
    %24 = arith.addf %19, %23 : vector<16x64xf32>
    %c0_13 = arith.constant 0 : index
    %c0_14 = arith.constant 0 : index
    %c0_15 = arith.constant 0 : index
    %25 = vector.load %arg6[%c0_13, %c0_14, %c0_15] : memref<2x1x64xf32, #tpu.memory_space<vmem>>, vector<1x1x64xf32>
    %26 = vector.shape_cast %25 : vector<1x1x64xf32> to vector<1x64xf32>
    %27 = vector.broadcast %26 : vector<1x64xf32> to vector<16x64xf32>
    %28 = arith.addf %24, %27 : vector<16x64xf32>
    %29 = vector.extract_strided_slice %28 {offsets = [0, 0], sizes = [16, 32], strides = [1, 1]} : vector<16x64xf32> to vector<16x32xf32>
    %cst_16 = arith.constant dense<0.000000e+00> : vector<16xf32>
    %30 = vector.multi_reduction <add>, %29, %cst_16 [1] : vector<16x32xf32> to vector<16xf32>
    %31 = vector.shape_cast %30 : vector<16xf32> to vector<16x1xf32>
    %cst_17 = arith.constant 3.200000e+01 : f32
    %32 = vector.broadcast %cst_17 : f32 to vector<16x1xf32>
    %33 = arith.divf %31, %32 : vector<16x1xf32>
    %34 = vector.broadcast %33 : vector<16x1xf32> to vector<16x32xf32>
    %35 = arith.subf %29, %34 : vector<16x32xf32>
    %36 = arith.mulf %35, %35 : vector<16x32xf32>
    %cst_18 = arith.constant dense<0.000000e+00> : vector<16xf32>
    %37 = vector.multi_reduction <add>, %36, %cst_18 [1] : vector<16x32xf32> to vector<16xf32>
    %38 = vector.shape_cast %37 : vector<16xf32> to vector<16x1xf32>
    %cst_19 = arith.constant 3.200000e+01 : f32
    %39 = vector.broadcast %cst_19 : f32 to vector<16x1xf32>
    %40 = arith.divf %38, %39 : vector<16x1xf32>
    %41 = vector.broadcast %33 : vector<16x1xf32> to vector<16x32xf32>
    %42 = arith.subf %29, %41 : vector<16x32xf32>
    %cst_20 = arith.constant 9.99999974E-5 : f32
    %43 = vector.broadcast %cst_20 : f32 to vector<16x1xf32>
    %44 = arith.addf %40, %43 : vector<16x1xf32>
    %45 = math.rsqrt %44 : vector<16x1xf32>
    %46 = vector.broadcast %45 : vector<16x1xf32> to vector<16x32xf32>
    %47 = arith.mulf %42, %46 : vector<16x32xf32>
    %c0_21 = arith.constant 0 : index
    %c0_22 = arith.constant 0 : index
    %c0_23 = arith.constant 0 : index
    %48 = vector.load %arg7[%c0_21, %c0_22, %c0_23] : memref<2x1x32xf32, #tpu.memory_space<vmem>>, vector<1x1x32xf32>
    %49 = vector.shape_cast %48 : vector<1x1x32xf32> to vector<1x32xf32>
    %50 = vector.broadcast %49 : vector<1x32xf32> to vector<16x32xf32>
    %51 = arith.mulf %47, %50 : vector<16x32xf32>
    %c0_24 = arith.constant 0 : index
    %c0_25 = arith.constant 0 : index
    %c0_26 = arith.constant 0 : index
    %52 = vector.load %arg8[%c0_24, %c0_25, %c0_26] : memref<2x1x32xf32, #tpu.memory_space<vmem>>, vector<1x1x32xf32>
    %53 = vector.shape_cast %52 : vector<1x1x32xf32> to vector<1x32xf32>
    %54 = vector.broadcast %53 : vector<1x32xf32> to vector<16x32xf32>
    %55 = arith.addf %51, %54 : vector<16x32xf32>
    %cst_27 = arith.constant 0.000000e+00 : f32
    %56 = vector.broadcast %cst_27 : f32 to vector<16x32xf32>
    %57 = arith.maximumf %55, %56 : vector<16x32xf32>
    %58 = vector.extract_strided_slice %28 {offsets = [0, 32], sizes = [16, 32], strides = [1, 1]} : vector<16x64xf32> to vector<16x32xf32>
    %cst_28 = arith.constant dense<0.000000e+00> : vector<16xf32>
    %59 = vector.multi_reduction <add>, %58, %cst_28 [1] : vector<16x32xf32> to vector<16xf32>
    %60 = vector.shape_cast %59 : vector<16xf32> to vector<16x1xf32>
    %cst_29 = arith.constant 3.200000e+01 : f32
    %61 = vector.broadcast %cst_29 : f32 to vector<16x1xf32>
    %62 = arith.divf %60, %61 : vector<16x1xf32>
    %63 = vector.broadcast %62 : vector<16x1xf32> to vector<16x32xf32>
    %64 = arith.subf %58, %63 : vector<16x32xf32>
    %65 = arith.mulf %64, %64 : vector<16x32xf32>
    %cst_30 = arith.constant dense<0.000000e+00> : vector<16xf32>
    %66 = vector.multi_reduction <add>, %65, %cst_30 [1] : vector<16x32xf32> to vector<16xf32>
    %67 = vector.shape_cast %66 : vector<16xf32> to vector<16x1xf32>
    %cst_31 = arith.constant 3.200000e+01 : f32
    %68 = vector.broadcast %cst_31 : f32 to vector<16x1xf32>
    %69 = arith.divf %67, %68 : vector<16x1xf32>
    %70 = vector.broadcast %62 : vector<16x1xf32> to vector<16x32xf32>
    %71 = arith.subf %58, %70 : vector<16x32xf32>
    %cst_32 = arith.constant 9.99999974E-5 : f32
    %72 = vector.broadcast %cst_32 : f32 to vector<16x1xf32>
    %73 = arith.addf %69, %72 : vector<16x1xf32>
    %74 = math.rsqrt %73 : vector<16x1xf32>
    %75 = vector.broadcast %74 : vector<16x1xf32> to vector<16x32xf32>
    %76 = arith.mulf %71, %75 : vector<16x32xf32>
    %c0_33 = arith.constant 0 : index
    %c0_34 = arith.constant 0 : index
    %c0_35 = arith.constant 0 : index
    %77 = vector.load %arg9[%c0_33, %c0_34, %c0_35] : memref<2x1x32xf32, #tpu.memory_space<vmem>>, vector<1x1x32xf32>
    %78 = vector.shape_cast %77 : vector<1x1x32xf32> to vector<1x32xf32>
    %79 = vector.broadcast %78 : vector<1x32xf32> to vector<16x32xf32>
    %80 = arith.mulf %76, %79 : vector<16x32xf32>
    %c0_36 = arith.constant 0 : index
    %c0_37 = arith.constant 0 : index
    %c0_38 = arith.constant 0 : index
    %81 = vector.load %arg10[%c0_36, %c0_37, %c0_38] : memref<2x1x32xf32, #tpu.memory_space<vmem>>, vector<1x1x32xf32>
    %82 = vector.shape_cast %81 : vector<1x1x32xf32> to vector<1x32xf32>
    %83 = vector.broadcast %82 : vector<1x32xf32> to vector<16x32xf32>
    %84 = arith.addf %80, %83 : vector<16x32xf32>
    %cst_39 = arith.constant 0.000000e+00 : f32
    %85 = vector.broadcast %cst_39 : f32 to vector<16x32xf32>
    %86 = arith.maximumf %84, %85 : vector<16x32xf32>
    %c0_40 = arith.constant 0 : index
    %c0_41 = arith.constant 0 : index
    %c0_42 = arith.constant 0 : index
    %87 = vector.load %arg11[%c0_40, %c0_41, %c0_42] : memref<2x32x32xf32, #tpu.memory_space<vmem>>, vector<1x32x32xf32>
    %88 = vector.shape_cast %87 : vector<1x32x32xf32> to vector<32x32xf32>
    %cst_43 = arith.constant dense<0.000000e+00> : vector<16x32xf32>
    %89 = tpu.matmul %86, %88, %cst_43 {dimension_numbers = #tpu.dot_dimension_numbers<[1], [0], [0], [1], [0, 0, 1, 1], [], []>} : vector<16x32xf32>, vector<32x32xf32>, vector<16x32xf32> -> vector<16x32xf32>
    %90 = arith.addf %57, %89 : vector<16x32xf32>
    %c0_44 = arith.constant 0 : index
    %c0_45 = arith.constant 0 : index
    %c0_46 = arith.constant 0 : index
    %91 = vector.load %arg12[%c0_44, %c0_45, %c0_46] : memref<2x1x32xf32, #tpu.memory_space<vmem>>, vector<1x1x32xf32>
    %92 = vector.shape_cast %91 : vector<1x1x32xf32> to vector<1x32xf32>
    %93 = vector.broadcast %92 : vector<1x32xf32> to vector<16x32xf32>
    %94 = arith.addf %90, %93 : vector<16x32xf32>
    %c0_i32 = arith.constant 0 : i32
    %95 = arith.index_cast %c0_i32 : i32 to index
    %c0_47 = arith.constant 0 : index
    %c0_48 = arith.constant 0 : index
    %c0_49 = arith.constant 0 : index
    %96 = vector.load %arg5[%95, %c0_47, %c0_48, %c0_49] : memref<1x3x32x64xf32, #tpu.memory_space<vmem>>, vector<1x3x32x64xf32>
    %97 = vector.shape_cast %96 : vector<1x3x32x64xf32> to vector<3x32x64xf32>
    %c1_i32_50 = arith.constant 1 : i32
    %98 = arith.addi %c0_i32, %c1_i32_50 : i32
    %99 = vector.broadcast %7 : vector<16x1xf32> to vector<16x32xf32>
    %100 = arith.mulf %94, %99 : vector<16x32xf32>
    %cst_51 = arith.constant 0.000000e+00 : f32
    %101 = vector.broadcast %cst_51 : f32 to vector<16x64xf32>
    %c1_i32_52 = arith.constant 1 : i32
    %102 = tpu.dynamic_rotate %100 by %c1_i32_52 dim 0 : vector<16x32xf32>, i32 -> vector<16x32xf32>
    %103 = vector.extract_strided_slice %97 {offsets = [0, 0, 0], sizes = [1, 32, 64], strides = [1, 1, 1]} : vector<3x32x64xf32> to vector<1x32x64xf32>
    %104 = vector.shape_cast %103 : vector<1x32x64xf32> to vector<32x64xf32>
    %cst_53 = arith.constant dense<0.000000e+00> : vector<16x64xf32>
    %105 = tpu.matmul %102, %104, %cst_53 {dimension_numbers = #tpu.dot_dimension_numbers<[1], [0], [0], [1], [0, 0, 1, 1], [], []>} : vector<16x32xf32>, vector<32x64xf32>, vector<16x64xf32> -> vector<16x64xf32>
    %106 = arith.addf %101, %105 : vector<16x64xf32>
    %107 = vector.extract_strided_slice %97 {offsets = [1, 0, 0], sizes = [1, 32, 64], strides = [1, 1, 1]} : vector<3x32x64xf32> to vector<1x32x64xf32>
    %108 = vector.shape_cast %107 : vector<1x32x64xf32> to vector<32x64xf32>
    %cst_54 = arith.constant dense<0.000000e+00> : vector<16x64xf32>
    %109 = tpu.matmul %100, %108, %cst_54 {dimension_numbers = #tpu.dot_dimension_numbers<[1], [0], [0], [1], [0, 0, 1, 1], [], []>} : vector<16x32xf32>, vector<32x64xf32>, vector<16x64xf32> -> vector<16x64xf32>
    %110 = arith.addf %106, %109 : vector<16x64xf32>
    %c15_i32_55 = arith.constant 15 : i32
    %111 = tpu.dynamic_rotate %100 by %c15_i32_55 dim 0 : vector<16x32xf32>, i32 -> vector<16x32xf32>
    %112 = vector.extract_strided_slice %97 {offsets = [2, 0, 0], sizes = [1, 32, 64], strides = [1, 1, 1]} : vector<3x32x64xf32> to vector<1x32x64xf32>
    %113 = vector.shape_cast %112 : vector<1x32x64xf32> to vector<32x64xf32>
    %cst_56 = arith.constant dense<0.000000e+00> : vector<16x64xf32>
    %114 = tpu.matmul %111, %113, %cst_56 {dimension_numbers = #tpu.dot_dimension_numbers<[1], [0], [0], [1], [0, 0, 1, 1], [], []>} : vector<16x32xf32>, vector<32x64xf32>, vector<16x64xf32> -> vector<16x64xf32>
    %115 = arith.addf %110, %114 : vector<16x64xf32>
    %116 = arith.index_cast %98 : i32 to index
    %c0_57 = arith.constant 0 : index
    %c0_58 = arith.constant 0 : index
    %117 = vector.load %arg6[%116, %c0_57, %c0_58] : memref<2x1x64xf32, #tpu.memory_space<vmem>>, vector<1x1x64xf32>
    %118 = vector.shape_cast %117 : vector<1x1x64xf32> to vector<1x64xf32>
    %119 = vector.broadcast %118 : vector<1x64xf32> to vector<16x64xf32>
    %120 = arith.addf %115, %119 : vector<16x64xf32>
    %121 = vector.extract_strided_slice %120 {offsets = [0, 0], sizes = [16, 32], strides = [1, 1]} : vector<16x64xf32> to vector<16x32xf32>
    %cst_59 = arith.constant dense<0.000000e+00> : vector<16xf32>
    %122 = vector.multi_reduction <add>, %121, %cst_59 [1] : vector<16x32xf32> to vector<16xf32>
    %123 = vector.shape_cast %122 : vector<16xf32> to vector<16x1xf32>
    %cst_60 = arith.constant 3.200000e+01 : f32
    %124 = vector.broadcast %cst_60 : f32 to vector<16x1xf32>
    %125 = arith.divf %123, %124 : vector<16x1xf32>
    %126 = vector.broadcast %125 : vector<16x1xf32> to vector<16x32xf32>
    %127 = arith.subf %121, %126 : vector<16x32xf32>
    %128 = arith.mulf %127, %127 : vector<16x32xf32>
    %cst_61 = arith.constant dense<0.000000e+00> : vector<16xf32>
    %129 = vector.multi_reduction <add>, %128, %cst_61 [1] : vector<16x32xf32> to vector<16xf32>
    %130 = vector.shape_cast %129 : vector<16xf32> to vector<16x1xf32>
    %cst_62 = arith.constant 3.200000e+01 : f32
    %131 = vector.broadcast %cst_62 : f32 to vector<16x1xf32>
    %132 = arith.divf %130, %131 : vector<16x1xf32>
    %133 = vector.broadcast %125 : vector<16x1xf32> to vector<16x32xf32>
    %134 = arith.subf %121, %133 : vector<16x32xf32>
    %cst_63 = arith.constant 9.99999974E-5 : f32
    %135 = vector.broadcast %cst_63 : f32 to vector<16x1xf32>
    %136 = arith.addf %132, %135 : vector<16x1xf32>
    %137 = math.rsqrt %136 : vector<16x1xf32>
    %138 = vector.broadcast %137 : vector<16x1xf32> to vector<16x32xf32>
    %139 = arith.mulf %134, %138 : vector<16x32xf32>
    %140 = arith.index_cast %98 : i32 to index
    %c0_64 = arith.constant 0 : index
    %c0_65 = arith.constant 0 : index
    %141 = vector.load %arg7[%140, %c0_64, %c0_65] : memref<2x1x32xf32, #tpu.memory_space<vmem>>, vector<1x1x32xf32>
    %142 = vector.shape_cast %141 : vector<1x1x32xf32> to vector<1x32xf32>
    %143 = vector.broadcast %142 : vector<1x32xf32> to vector<16x32xf32>
    %144 = arith.mulf %139, %143 : vector<16x32xf32>
    %145 = arith.index_cast %98 : i32 to index
    %c0_66 = arith.constant 0 : index
    %c0_67 = arith.constant 0 : index
    %146 = vector.load %arg8[%145, %c0_66, %c0_67] : memref<2x1x32xf32, #tpu.memory_space<vmem>>, vector<1x1x32xf32>
    %147 = vector.shape_cast %146 : vector<1x1x32xf32> to vector<1x32xf32>
    %148 = vector.broadcast %147 : vector<1x32xf32> to vector<16x32xf32>
    %149 = arith.addf %144, %148 : vector<16x32xf32>
    %cst_68 = arith.constant 0.000000e+00 : f32
    %150 = vector.broadcast %cst_68 : f32 to vector<16x32xf32>
    %151 = arith.maximumf %149, %150 : vector<16x32xf32>
    %152 = vector.extract_strided_slice %120 {offsets = [0, 32], sizes = [16, 32], strides = [1, 1]} : vector<16x64xf32> to vector<16x32xf32>
    %cst_69 = arith.constant dense<0.000000e+00> : vector<16xf32>
    %153 = vector.multi_reduction <add>, %152, %cst_69 [1] : vector<16x32xf32> to vector<16xf32>
    %154 = vector.shape_cast %153 : vector<16xf32> to vector<16x1xf32>
    %cst_70 = arith.constant 3.200000e+01 : f32
    %155 = vector.broadcast %cst_70 : f32 to vector<16x1xf32>
    %156 = arith.divf %154, %155 : vector<16x1xf32>
    %157 = vector.broadcast %156 : vector<16x1xf32> to vector<16x32xf32>
    %158 = arith.subf %152, %157 : vector<16x32xf32>
    %159 = arith.mulf %158, %158 : vector<16x32xf32>
    %cst_71 = arith.constant dense<0.000000e+00> : vector<16xf32>
    %160 = vector.multi_reduction <add>, %159, %cst_71 [1] : vector<16x32xf32> to vector<16xf32>
    %161 = vector.shape_cast %160 : vector<16xf32> to vector<16x1xf32>
    %cst_72 = arith.constant 3.200000e+01 : f32
    %162 = vector.broadcast %cst_72 : f32 to vector<16x1xf32>
    %163 = arith.divf %161, %162 : vector<16x1xf32>
    %164 = vector.broadcast %156 : vector<16x1xf32> to vector<16x32xf32>
    %165 = arith.subf %152, %164 : vector<16x32xf32>
    %cst_73 = arith.constant 9.99999974E-5 : f32
    %166 = vector.broadcast %cst_73 : f32 to vector<16x1xf32>
    %167 = arith.addf %163, %166 : vector<16x1xf32>
    %168 = math.rsqrt %167 : vector<16x1xf32>
    %169 = vector.broadcast %168 : vector<16x1xf32> to vector<16x32xf32>
    %170 = arith.mulf %165, %169 : vector<16x32xf32>
    %171 = arith.index_cast %98 : i32 to index
    %c0_74 = arith.constant 0 : index
    %c0_75 = arith.constant 0 : index
    %172 = vector.load %arg9[%171, %c0_74, %c0_75] : memref<2x1x32xf32, #tpu.memory_space<vmem>>, vector<1x1x32xf32>
    %173 = vector.shape_cast %172 : vector<1x1x32xf32> to vector<1x32xf32>
    %174 = vector.broadcast %173 : vector<1x32xf32> to vector<16x32xf32>
    %175 = arith.mulf %170, %174 : vector<16x32xf32>
    %176 = arith.index_cast %98 : i32 to index
    %c0_76 = arith.constant 0 : index
    %c0_77 = arith.constant 0 : index
    %177 = vector.load %arg10[%176, %c0_76, %c0_77] : memref<2x1x32xf32, #tpu.memory_space<vmem>>, vector<1x1x32xf32>
    %178 = vector.shape_cast %177 : vector<1x1x32xf32> to vector<1x32xf32>
    %179 = vector.broadcast %178 : vector<1x32xf32> to vector<16x32xf32>
    %180 = arith.addf %175, %179 : vector<16x32xf32>
    %cst_78 = arith.constant 0.000000e+00 : f32
    %181 = vector.broadcast %cst_78 : f32 to vector<16x32xf32>
    %182 = arith.maximumf %180, %181 : vector<16x32xf32>
    %183 = arith.index_cast %98 : i32 to index
    %c0_79 = arith.constant 0 : index
    %c0_80 = arith.constant 0 : index
    %184 = vector.load %arg11[%183, %c0_79, %c0_80] : memref<2x32x32xf32, #tpu.memory_space<vmem>>, vector<1x32x32xf32>
    %185 = vector.shape_cast %184 : vector<1x32x32xf32> to vector<32x32xf32>
    %cst_81 = arith.constant dense<0.000000e+00> : vector<16x32xf32>
    %186 = tpu.matmul %182, %185, %cst_81 {dimension_numbers = #tpu.dot_dimension_numbers<[1], [0], [0], [1], [0, 0, 1, 1], [], []>} : vector<16x32xf32>, vector<32x32xf32>, vector<16x32xf32> -> vector<16x32xf32>
    %187 = arith.addf %151, %186 : vector<16x32xf32>
    %188 = arith.index_cast %98 : i32 to index
    %c0_82 = arith.constant 0 : index
    %c0_83 = arith.constant 0 : index
    %189 = vector.load %arg12[%188, %c0_82, %c0_83] : memref<2x1x32xf32, #tpu.memory_space<vmem>>, vector<1x1x32xf32>
    %190 = vector.shape_cast %189 : vector<1x1x32xf32> to vector<1x32xf32>
    %191 = vector.broadcast %190 : vector<1x32xf32> to vector<16x32xf32>
    %192 = arith.addf %187, %191 : vector<16x32xf32>
    %c1_i32_84 = arith.constant 1 : i32
    %193 = vector.extract_strided_slice %192 {offsets = [2, 0], sizes = [8, 32], strides = [1, 1]} : vector<16x32xf32> to vector<8x32xf32>
    %c0_85 = arith.constant 0 : index
    %c0_86 = arith.constant 0 : index
    %194 = vector.load %arg13[%c0_85, %c0_86] : memref<32x4xf32, #tpu.memory_space<vmem>>, vector<32x4xf32>
    %cst_87 = arith.constant dense<0.000000e+00> : vector<8x4xf32>
    %195 = tpu.matmul %193, %194, %cst_87 {dimension_numbers = #tpu.dot_dimension_numbers<[1], [0], [0], [1], [0, 0, 1, 1], [], []>} : vector<8x32xf32>, vector<32x4xf32>, vector<8x4xf32> -> vector<8x4xf32>
    %c0_88 = arith.constant 0 : index
    %c0_89 = arith.constant 0 : index
    %196 = vector.load %arg14[%c0_88, %c0_89] : memref<1x4xf32, #tpu.memory_space<vmem>>, vector<1x4xf32>
    %197 = vector.broadcast %196 : vector<1x4xf32> to vector<8x4xf32>
    %198 = arith.addf %195, %197 : vector<8x4xf32>
    %199 = vector.extract_strided_slice %4 {offsets = [2, 0], sizes = [8, 4], strides = [1, 1]} : vector<16x4xf32> to vector<8x4xf32>
    %200 = vector.extract_strided_slice %7 {offsets = [2, 0], sizes = [8, 1], strides = [1, 1]} : vector<16x1xf32> to vector<8x1xf32>
    %201 = arith.addf %199, %198 : vector<8x4xf32>
    %202 = vector.broadcast %200 : vector<8x1xf32> to vector<8x4xf32>
    %203 = arith.mulf %201, %202 : vector<8x4xf32>
    %c0_90 = arith.constant 0 : index
    %c0_91 = arith.constant 0 : index
    %c0_92 = arith.constant 0 : index
    %204 = vector.load %arg15[%c0_90, %c0_91, %c0_92] : memref<1x8x4xf32, #tpu.memory_space<vmem>>, vector<1x8x4xf32>
    %205 = vector.shape_cast %204 : vector<1x8x4xf32> to vector<8x4xf32>
    %206 = vector.shape_cast %203 : vector<8x4xf32> to vector<1x8x4xf32>
    tpu.vector_store %arg15[%c0_90, %c0_91, %c0_92], %206 {strides = array<i32>} : memref<1x8x4xf32, #tpu.memory_space<vmem>>, vector<1x8x4xf32>,
    return
  }
  func.func @transform_0(%arg0: i32, %arg1: i32) -> (i32, i32, i32) {
    %c0_i32 = arith.constant 0 : i32
    %c0_i32_0 = arith.constant 0 : i32
    %c0_i32_1 = arith.constant 0 : i32
    return %arg0, %c0_i32, %c0_i32_0 : i32, i32, i32
  }
  func.func @transform_1(%arg0: i32, %arg1: i32) -> (i32, i32, i32) {
    %c0_i32 = arith.constant 0 : i32
    %c0_i32_0 = arith.constant 0 : i32
    %c0_i32_1 = arith.constant 0 : i32
    return %arg0, %c0_i32, %c0_i32_0 : i32, i32, i32
  }
  func.func @transform_2(%arg0: i32, %arg1: i32) -> (i32, i32, i32) {
    %c0_i32 = arith.constant 0 : i32
    %c0_i32_0 = arith.constant 0 : i32
    %c0_i32_1 = arith.constant 0 : i32
    %c0_i32_2 = arith.constant 0 : i32
    return %c0_i32, %c0_i32_0, %c0_i32_1 : i32, i32, i32
  }
  func.func @transform_3(%arg0: i32, %arg1: i32) -> (i32, i32, i32, i32) {
    %c0_i32 = arith.constant 0 : i32
    %c0_i32_0 = arith.constant 0 : i32
    %c0_i32_1 = arith.constant 0 : i32
    %c0_i32_2 = arith.constant 0 : i32
    %c0_i32_3 = arith.constant 0 : i32
    return %c0_i32, %c0_i32_0, %c0_i32_1, %c0_i32_2 : i32, i32, i32, i32
  }
  func.func @transform_4(%arg0: i32, %arg1: i32) -> (i32, i32, i32) {
    %c0_i32 = arith.constant 0 : i32
    %c0_i32_0 = arith.constant 0 : i32
    %c0_i32_1 = arith.constant 0 : i32
    %c0_i32_2 = arith.constant 0 : i32
    return %c0_i32, %c0_i32_0, %c0_i32_1 : i32, i32, i32
  }
  func.func @transform_5(%arg0: i32, %arg1: i32) -> (i32, i32, i32) {
    %c0_i32 = arith.constant 0 : i32
    %c0_i32_0 = arith.constant 0 : i32
    %c0_i32_1 = arith.constant 0 : i32
    %c0_i32_2 = arith.constant 0 : i32
    return %c0_i32, %c0_i32_0, %c0_i32_1 : i32, i32, i32
  }
  func.func @transform_6(%arg0: i32, %arg1: i32) -> (i32, i32, i32) {
    %c0_i32 = arith.constant 0 : i32
    %c0_i32_0 = arith.constant 0 : i32
    %c0_i32_1 = arith.constant 0 : i32
    %c0_i32_2 = arith.constant 0 : i32
    return %c0_i32, %c0_i32_0, %c0_i32_1 : i32, i32, i32
  }
  func.func @transform_7(%arg0: i32, %arg1: i32) -> (i32, i32, i32) {
    %c0_i32 = arith.constant 0 : i32
    %c0_i32_0 = arith.constant 0 : i32
    %c0_i32_1 = arith.constant 0 : i32
    %c0_i32_2 = arith.constant 0 : i32
    return %c0_i32, %c0_i32_0, %c0_i32_1 : i32, i32, i32
  }
  func.func @transform_8(%arg0: i32, %arg1: i32) -> (i32, i32, i32) {
    %c0_i32 = arith.constant 0 : i32
    %c0_i32_0 = arith.constant 0 : i32
    %c0_i32_1 = arith.constant 0 : i32
    %c0_i32_2 = arith.constant 0 : i32
    return %c0_i32, %c0_i32_0, %c0_i32_1 : i32, i32, i32
  }
  func.func @transform_9(%arg0: i32, %arg1: i32) -> (i32, i32, i32) {
    %c0_i32 = arith.constant 0 : i32
    %c0_i32_0 = arith.constant 0 : i32
    %c0_i32_1 = arith.constant 0 : i32
    %c0_i32_2 = arith.constant 0 : i32
    return %c0_i32, %c0_i32_0, %c0_i32_1 : i32, i32, i32
  }
  func.func @transform_10(%arg0: i32, %arg1: i32) -> (i32, i32, i32) {
    %c0_i32 = arith.constant 0 : i32
    %c0_i32_0 = arith.constant 0 : i32
    %c0_i32_1 = arith.constant 0 : i32
    %c0_i32_2 = arith.constant 0 : i32
    return %c0_i32, %c0_i32_0, %c0_i32_1 : i32, i32, i32
  }
  func.func @transform_11(%arg0: i32, %arg1: i32) -> (i32, i32) {
    %c0_i32 = arith.constant 0 : i32
    %c0_i32_0 = arith.constant 0 : i32
    %c0_i32_1 = arith.constant 0 : i32
    return %c0_i32, %c0_i32_0 : i32, i32
  }
  func.func @transform_12(%arg0: i32, %arg1: i32) -> (i32, i32) {
    %c0_i32 = arith.constant 0 : i32
    %c0_i32_0 = arith.constant 0 : i32
    %c0_i32_1 = arith.constant 0 : i32
    return %c0_i32, %c0_i32_0 : i32, i32
  }
  func.func @transform_13(%arg0: i32, %arg1: i32) -> (i32, i32, i32) {
    %c0_i32 = arith.constant 0 : i32
    %c0_i32_0 = arith.constant 0 : i32
    return %arg0, %arg1, %c0_i32 : i32, i32, i32
  }
}

</mosaic_0001>

<llo_original>
// kernel: tpu_custom_call.1
$region0: #{tpu_custom_call.1}
  #allocation0 [shape = 'u32[]', space=smem, size = 0x4, offset = 0x4, fixed_abs, tag = 'smem constant byte address 0x4 - core index']
  #allocation1 [shape = 'u32[72,128]{1,0:T(1,128)}', space=vmem, size = 0x9000, scoped, tag = 'internal scratch']
  %s0 = inlined_call_operand.vmem [shape: f32[2,24,4], index: 0, kind: input, shape index: {}]
  %s1 = inlined_call_operand.vmem [shape: f32[2,24,1], index: 1, kind: input, shape index: {}]
  %s2 = inlined_call_operand.vmem [shape: f32[3,4,64], index: 2, kind: input, shape index: {}]
  %s3 = inlined_call_operand.vmem [shape: f32[1,3,32,64], index: 3, kind: input, shape index: {}]
  %s4 = inlined_call_operand.vmem [shape: f32[2,1,64], index: 4, kind: input, shape index: {}]
  %s5 = inlined_call_operand.vmem [shape: f32[2,1,32], index: 5, kind: input, shape index: {}]
  %s6 = inlined_call_operand.vmem [shape: f32[2,1,32], index: 6, kind: input, shape index: {}]
  %s7 = inlined_call_operand.vmem [shape: f32[2,1,32], index: 7, kind: input, shape index: {}]
  %s8 = inlined_call_operand.vmem [shape: f32[2,1,32], index: 8, kind: input, shape index: {}]
  %s9 = inlined_call_operand.hbm [shape: f32[2,32,32], index: 9, kind: input, shape index: {}]
  %s10 = inlined_call_operand.vmem [shape: f32[2,1,32], index: 10, kind: input, shape index: {}]
  %s11 = inlined_call_operand.vmem [shape: f32[32,4], index: 11, kind: input, shape index: {}]
  %s12 = inlined_call_operand.vmem [shape: f32[1,4], index: 12, kind: input, shape index: {}]
  %s13 = inlined_call_operand.vmem [shape: f32[2,16,4], index: 13, kind: output, shape index: {}]
  %s14 = sld [smem:[#allocation0]]
  $region89: #{tpu_custom_call.1} parent=0
    _
  %s16 = ssub.s32 1, %s14
  %s17 = scalar_select 0, %s16, %s14
  $region1: #{tpu_custom_call.1} parent=0
    #allocation2 [shape = 'u8[32768]{0}', space=vmem, size = 0x8000, scoped, tag = 'input window, operand 9, single buffered']
    #allocation3 [shape = 's32[2]{0}', space=sflag, size = 0x8, scoped, tag = 'scoped memory for tpu_custom_call.1']
    %18 = vsyncpa [#allocation3], 0
    loop: start=0, step=1, limit=6
    $region2: #{tpu_custom_call.1} parent=1 // loop_pre_header
      _
    $region3: #{tpu_custom_call.1} parent=1 // loop_header
      %s20 = sphi 0, %s24
      %p21 = scmp.ge.s32.totalorder %s20, 6
      %s27 = sphi 0, %s39
      %s28 = sphi 0, %s35
      %s29 = sphi 0, %s27
      %s30 = sphi 0, %s28
      %s31 = sphi 0, %s29
      %s32 = sphi 0, %s30
      %s42 = sphi 0, %s44
      %s45 = sphi 0, %s42
      %s46 = sphi 0, %s45
      %s62 = sphi 0, %s46
      %s68 = sphi 0, %s70
      %s71 = sphi 0, %s68
      %s72 = sphi 0, %s71
      %s88 = sphi 0, %s72
      %s92 = sphi 0, %s92
      %s94 = sphi 0, %s92
      %s95 = sphi 0, %s94
      %s109 = sphi 0, %s95
      %s113 = sphi 0, %s113
      %s115 = sphi 0, %s113
      %s116 = sphi 0, %s115
      %s130 = sphi 0, %s116
      %s134 = sphi 0, %s134
      %s136 = sphi 0, %s134
      %s137 = sphi 0, %s136
      %s151 = sphi 0, %s137
      %s155 = sphi 0, %s155
      %s157 = sphi 0, %s155
      %s158 = sphi 0, %s157
      %s172 = sphi 0, %s158
      %s176 = sphi 0, %s176
      %s178 = sphi 0, %s176
      %s179 = sphi 0, %s178
      %s193 = sphi 0, %s179
      %s197 = sphi 0, %s197
      %s199 = sphi 0, %s197
      %s200 = sphi 0, %s199
      %s214 = sphi 0, %s200
      %s218 = sphi 0, %s218
      %s220 = sphi 0, %s218
      %s221 = sphi 0, %s220
      %s235 = sphi 0, %s221
      %s239 = sphi 0, %s239
      %s241 = sphi 0, %s239
      %s242 = sphi 0, %s241
      %s256 = sphi 0, %s242
      %s260 = sphi 0, %s260
      %s262 = sphi 0, %s260
      %s263 = sphi 0, %s262
      %s277 = sphi 0, %s263
      %s281 = sphi 0, %s281
      %s283 = sphi 0, %s281
      %s284 = sphi 0, %s283
      %s298 = sphi 0, %s284
      %s302 = sphi 0, %s302
      %s304 = sphi 0, %s302
      %s305 = sphi 0, %s304
      %s319 = sphi 0, %s305
      %s327 = sphi 0, %s329
      %s330 = sphi 0, %s327
      %s331 = sphi 0, %s330
      %s347 = sphi 0, %s331
    $region4: #{tpu_custom_call.1} parent=1 // loop_header_branch
      %23 = sbr.rel (%p21) target = $region8
    $region5: #{tpu_custom_call.1} parent=1 // loop_body
      %s25 = ssub.s32 %s20, 1
      %s26 = ssub.s32 %s20, 2
      %s33 = sadd.s32 1, %s28
      %p34 = scmp.ge.s32.totalorder %s33, 2
      %s35 = scalar_select %p34, 0, %s33
      %s36 = sadd.s32 1, %s27
      %s37 = scalar_select %p34, %s36, %s27
      %p38 = scmp.ge.s32.totalorder %s37, 2
      %s39 = scalar_select %p38, 0, %s37
      %s40 = ssub.s32 %s27, %s39
      %p41 = scmp.eq.s32.totalorder %s40, 0
      %s43 = sadd.s32 %s42, 1
      %s44 = scalar_select %p41, %s42, %s43
      %p47 = pneg %p41
      %p48 = scmp.eq.s32.totalorder %s20, 3
      %p49 = por %p47, %p48
      %p50 = scmp.ne.s32.totalorder %s42, %s45
      %p51 = scmp.eq.s32.totalorder %s20, 0
      %p52 = por %p50, %p51
      %p53 = scmp.ne.s32.totalorder %s42, %s45
      %p54 = scmp.eq.s32.totalorder %s25, 3
      %p55 = por %p53, %p54
      %p56 = scmp.ne.s32.totalorder %s45, %s46
      %p57 = scmp.eq.s32.totalorder %s25, 0
      %p58 = por %p56, %p57
      %p59 = scmp.ne.s32.totalorder %s45, %s46
      %p60 = scmp.eq.s32.totalorder %s26, 3
      %p61 = por %p59, %p60
      %p63 = scmp.ne.s32.totalorder %s46, %s62
      %p64 = scmp.eq.s32.totalorder %s26, 0
      %p65 = por %p63, %p64
      %s66 = ssub.s32 %s27, %s39
      %p67 = scmp.eq.s32.totalorder %s66, 0
      %s69 = sadd.s32 %s68, 1
      %s70 = scalar_select %p67, %s68, %s69
      %p73 = pneg %p67
      %p74 = scmp.eq.s32.totalorder %s20, 3
      %p75 = por %p73, %p74
      %p76 = scmp.ne.s32.totalorder %s68, %s71
      %p77 = scmp.eq.s32.totalorder %s20, 0
      %p78 = por %p76, %p77
      %p79 = scmp.ne.s32.totalorder %s68, %s71
      %p80 = scmp.eq.s32.totalorder %s25, 3
      %p81 = por %p79, %p80
      %p82 = scmp.ne.s32.totalorder %s71, %s72
      %p83 = scmp.eq.s32.totalorder %s25, 0
      %p84 = por %p82, %p83
      %p85 = scmp.ne.s32.totalorder %s71, %s72
      %p86 = scmp.eq.s32.totalorder %s26, 3
      %p87 = por %p85, %p86
      %p89 = scmp.ne.s32.totalorder %s72, %s88
      %p90 = scmp.eq.s32.totalorder %s26, 0
      %p91 = por %p89, %p90
      %s93 = sadd.s32 %s92, 1
      %p96 = scmp.eq.s32.totalorder %s20, 3
      %p97 = scmp.ne.s32.totalorder %s92, %s94
      %p98 = scmp.eq.s32.totalorder %s20, 0
      %p99 = por %p97, %p98
      %p100 = scmp.ne.s32.totalorder %s92, %s94
      %p101 = scmp.eq.s32.totalorder %s25, 3
      %p102 = por %p100, %p101
      %p103 = scmp.ne.s32.totalorder %s94, %s95
      %p104 = scmp.eq.s32.totalorder %s25, 0
      %p105 = por %p103, %p104
      %p106 = scmp.ne.s32.totalorder %s94, %s95
      %p107 = scmp.eq.s32.totalorder %s26, 3
      %p108 = por %p106, %p107
      %p110 = scmp.ne.s32.totalorder %s95, %s109
      %p111 = scmp.eq.s32.totalorder %s26, 0
      %p112 = por %p110, %p111
      %s114 = sadd.s32 %s113, 1
      %p117 = scmp.eq.s32.totalorder %s20, 3
      %p118 = scmp.ne.s32.totalorder %s113, %s115
      %p119 = scmp.eq.s32.totalorder %s20, 0
      %p120 = por %p118, %p119
      %p121 = scmp.ne.s32.totalorder %s113, %s115
      %p122 = scmp.eq.s32.totalorder %s25, 3
      %p123 = por %p121, %p122
      %p124 = scmp.ne.s32.totalorder %s115, %s116
      %p125 = scmp.eq.s32.totalorder %s25, 0
      %p126 = por %p124, %p125
      %p127 = scmp.ne.s32.totalorder %s115, %s116
      %p128 = scmp.eq.s32.totalorder %s26, 3
      %p129 = por %p127, %p128
      %p131 = scmp.ne.s32.totalorder %s116, %s130
      %p132 = scmp.eq.s32.totalorder %s26, 0
      %p133 = por %p131, %p132
      %s135 = sadd.s32 %s134, 1
      %p138 = scmp.eq.s32.totalorder %s20, 3
      %p139 = scmp.ne.s32.totalorder %s134, %s136
      %p140 = scmp.eq.s32.totalorder %s20, 0
      %p141 = por %p139, %p140
      %p142 = scmp.ne.s32.totalorder %s134, %s136
      %p143 = scmp.eq.s32.totalorder %s25, 3
      %p144 = por %p142, %p143
      %p145 = scmp.ne.s32.totalorder %s136, %s137
      %p146 = scmp.eq.s32.totalorder %s25, 0
      %p147 = por %p145, %p146
      %p148 = scmp.ne.s32.totalorder %s136, %s137
      %p149 = scmp.eq.s32.totalorder %s26, 3
      %p150 = por %p148, %p149
      %p152 = scmp.ne.s32.totalorder %s137, %s151
      %p153 = scmp.eq.s32.totalorder %s26, 0
      %p154 = por %p152, %p153
      %s156 = sadd.s32 %s155, 1
      %p159 = scmp.eq.s32.totalorder %s20, 3
      %p160 = scmp.ne.s32.totalorder %s155, %s157
      %p161 = scmp.eq.s32.totalorder %s20, 0
      %p162 = por %p160, %p161
      %p163 = scmp.ne.s32.totalorder %s155, %s157
      %p164 = scmp.eq.s32.totalorder %s25, 3
      %p165 = por %p163, %p164
      %p166 = scmp.ne.s32.totalorder %s157, %s158
      %p167 = scmp.eq.s32.totalorder %s25, 0
      %p168 = por %p166, %p167
      %p169 = scmp.ne.s32.totalorder %s157, %s158
      %p170 = scmp.eq.s32.totalorder %s26, 3
      %p171 = por %p169, %p170
      %p173 = scmp.ne.s32.totalorder %s158, %s172
      %p174 = scmp.eq.s32.totalorder %s26, 0
      %p175 = por %p173, %p174
      %s177 = sadd.s32 %s176, 1
      %p180 = scmp.eq.s32.totalorder %s20, 3
      %p181 = scmp.ne.s32.totalorder %s176, %s178
      %p182 = scmp.eq.s32.totalorder %s20, 0
      %p183 = por %p181, %p182
      %p184 = scmp.ne.s32.totalorder %s176, %s178
      %p185 = scmp.eq.s32.totalorder %s25, 3
      %p186 = por %p184, %p185
      %p187 = scmp.ne.s32.totalorder %s178, %s179
      %p188 = scmp.eq.s32.totalorder %s25, 0
      %p189 = por %p187, %p188
      %p190 = scmp.ne.s32.totalorder %s178, %s179
      %p191 = scmp.eq.s32.totalorder %s26, 3
      %p192 = por %p190, %p191
      %p194 = scmp.ne.s32.totalorder %s179, %s193
      %p195 = scmp.eq.s32.totalorder %s26, 0
      %p196 = por %p194, %p195
      %s198 = sadd.s32 %s197, 1
      %p201 = scmp.eq.s32.totalorder %s20, 3
      %p202 = scmp.ne.s32.totalorder %s197, %s199
      %p203 = scmp.eq.s32.totalorder %s20, 0
      %p204 = por %p202, %p203
      %p205 = scmp.ne.s32.totalorder %s197, %s199
      %p206 = scmp.eq.s32.totalorder %s25, 3
      %p207 = por %p205, %p206
      %p208 = scmp.ne.s32.totalorder %s199, %s200
      %p209 = scmp.eq.s32.totalorder %s25, 0
      %p210 = por %p208, %p209
      %p211 = scmp.ne.s32.totalorder %s199, %s200
      %p212 = scmp.eq.s32.totalorder %s26, 3
      %p213 = por %p211, %p212
      %p215 = scmp.ne.s32.totalorder %s200, %s214
      %p216 = scmp.eq.s32.totalorder %s26, 0
      %p217 = por %p215, %p216
      %s219 = sadd.s32 %s218, 1
      %p222 = scmp.eq.s32.totalorder %s20, 3
      %p223 = scmp.ne.s32.totalorder %s218, %s220
      %p224 = scmp.eq.s32.totalorder %s20, 0
      %p225 = por %p223, %p224
      %p226 = scmp.ne.s32.totalorder %s218, %s220
      %p227 = scmp.eq.s32.totalorder %s25, 3
      %p228 = por %p226, %p227
      %p229 = scmp.ne.s32.totalorder %s220, %s221
      %p230 = scmp.eq.s32.totalorder %s25, 0
      %p231 = por %p229, %p230
      %p232 = scmp.ne.s32.totalorder %s220, %s221
      %p233 = scmp.eq.s32.totalorder %s26, 3
      %p234 = por %p232, %p233
      %p236 = scmp.ne.s32.totalorder %s221, %s235
      %p237 = scmp.eq.s32.totalorder %s26, 0
      %p238 = por %p236, %p237
      %s240 = sadd.s32 %s239, 1
      %p243 = scmp.eq.s32.totalorder %s20, 3
      %p244 = scmp.ne.s32.totalorder %s239, %s241
      %p245 = scmp.eq.s32.totalorder %s20, 0
      %p246 = por %p244, %p245
      %p247 = scmp.ne.s32.totalorder %s239, %s241
      %p248 = scmp.eq.s32.totalorder %s25, 3
      %p249 = por %p247, %p248
      %p250 = scmp.ne.s32.totalorder %s241, %s242
      %p251 = scmp.eq.s32.totalorder %s25, 0
      %p252 = por %p250, %p251
      %p253 = scmp.ne.s32.totalorder %s241, %s242
      %p254 = scmp.eq.s32.totalorder %s26, 3
      %p255 = por %p253, %p254
      %p257 = scmp.ne.s32.totalorder %s242, %s256
      %p258 = scmp.eq.s32.totalorder %s26, 0
      %p259 = por %p257, %p258
      %s261 = sadd.s32 %s260, 1
      %p264 = scmp.eq.s32.totalorder %s20, 3
      %p265 = scmp.ne.s32.totalorder %s260, %s262
      %p266 = scmp.eq.s32.totalorder %s20, 0
      %p267 = por %p265, %p266
      %p268 = scmp.ne.s32.totalorder %s260, %s262
      %p269 = scmp.eq.s32.totalorder %s25, 3
      %p270 = por %p268, %p269
      %p271 = scmp.ne.s32.totalorder %s262, %s263
      %p272 = scmp.eq.s32.totalorder %s25, 0
      %p273 = por %p271, %p272
      %p274 = scmp.ne.s32.totalorder %s262, %s263
      %p275 = scmp.eq.s32.totalorder %s26, 3
      %p276 = por %p274, %p275
      %p278 = scmp.ne.s32.totalorder %s263, %s277
      %p279 = scmp.eq.s32.totalorder %s26, 0
      %p280 = por %p278, %p279
      %s282 = sadd.s32 %s281, 1
      %p285 = scmp.eq.s32.totalorder %s20, 3
      %p286 = scmp.ne.s32.totalorder %s281, %s283
      %p287 = scmp.eq.s32.totalorder %s20, 0
      %p288 = por %p286, %p287
      %p289 = scmp.ne.s32.totalorder %s281, %s283
      %p290 = scmp.eq.s32.totalorder %s25, 3
      %p291 = por %p289, %p290
      %p292 = scmp.ne.s32.totalorder %s283, %s284
      %p293 = scmp.eq.s32.totalorder %s25, 0
      %p294 = por %p292, %p293
      %p295 = scmp.ne.s32.totalorder %s283, %s284
      %p296 = scmp.eq.s32.totalorder %s26, 3
      %p297 = por %p295, %p296
      %p299 = scmp.ne.s32.totalorder %s284, %s298
      %p300 = scmp.eq.s32.totalorder %s26, 0
      %p301 = por %p299, %p300
      %s303 = sadd.s32 %s302, 1
      %p306 = scmp.eq.s32.totalorder %s20, 3
      %p307 = scmp.ne.s32.totalorder %s302, %s304
      %p308 = scmp.eq.s32.totalorder %s20, 0
      %p309 = por %p307, %p308
      %p310 = scmp.ne.s32.totalorder %s302, %s304
      %p311 = scmp.eq.s32.totalorder %s25, 3
      %p312 = por %p310, %p311
      %p313 = scmp.ne.s32.totalorder %s304, %s305
      %p314 = scmp.eq.s32.totalorder %s25, 0
      %p315 = por %p313, %p314
      %p316 = scmp.ne.s32.totalorder %s304, %s305
      %p317 = scmp.eq.s32.totalorder %s26, 3
      %p318 = por %p316, %p317
      %p320 = scmp.ne.s32.totalorder %s305, %s319
      %p321 = scmp.eq.s32.totalorder %s26, 0
      %p322 = por %p320, %p321
      %s323 = ssub.s32 %s27, %s39
      %s324 = ssub.s32 %s28, %s35
      %s325 = sor.u32 %s323, %s324
      %p326 = scmp.eq.s32.totalorder %s325, 0
      %s328 = sadd.s32 %s327, 1
      %s329 = scalar_select %p326, %s327, %s328
      %p332 = pneg %p326
      %p333 = scmp.eq.s32.totalorder %s20, 3
      %p334 = por %p332, %p333
      %p335 = scmp.ne.s32.totalorder %s327, %s330
      %p336 = scmp.eq.s32.totalorder %s20, 0
      %p337 = por %p335, %p336
      %p338 = scmp.ne.s32.totalorder %s327, %s330
      %p339 = scmp.eq.s32.totalorder %s25, 3
      %p340 = por %p338, %p339
      %p341 = scmp.ne.s32.totalorder %s330, %s331
      %p342 = scmp.eq.s32.totalorder %s25, 0
      %p343 = por %p341, %p342
      %p344 = scmp.ne.s32.totalorder %s330, %s331
      %p345 = scmp.eq.s32.totalorder %s26, 3
      %p346 = por %p344, %p345
      %p348 = scmp.ne.s32.totalorder %s331, %s347
      %p349 = scmp.eq.s32.totalorder %s26, 0
      %p350 = por %p348, %p349
      %p351 = scmp.le.s32.totalorder 1, %s20
      %p352 = scmp.lt.s32.totalorder %s20, 5
      %p353 = pnand %p351, %p352
      %p354 = pneg %p353
      // Predicated region
      $region9: #{tpu_custom_call.1} parent=5 // pred_check
        _
      $region10: #{tpu_custom_call.1} parent=5 // pred_check_branch
        %356 = sbr.rel (%p353) target = $region12
      $region11: #{tpu_custom_call.1} parent=5 // pred_region
        %s357 = ssub.s32 %s20, 1
        // Predicated region
        $region13: #{tpu_custom_call.1} parent=11 // pred_check
          %p358 = pneg %p105
        $region14: #{tpu_custom_call.1} parent=11 // pred_check_branch
          %360 = sbr.rel (%p358) target = $region16
        $region15: #{tpu_custom_call.1} parent=11 // pred_region
          _
        $region16: #{tpu_custom_call.1} parent=11 // pred_fallthru
          _
        // Predicated region
        $region17: #{tpu_custom_call.1} parent=11 // pred_check
          %p361 = pneg %p126
        $region18: #{tpu_custom_call.1} parent=11 // pred_check_branch
          %363 = sbr.rel (%p361) target = $region20
        $region19: #{tpu_custom_call.1} parent=11 // pred_region
          _
        $region20: #{tpu_custom_call.1} parent=11 // pred_fallthru
          _
        // Predicated region
        $region21: #{tpu_custom_call.1} parent=11 // pred_check
          %p364 = pneg %p147
        $region22: #{tpu_custom_call.1} parent=11 // pred_check_branch
          %366 = sbr.rel (%p364) target = $region24
        $region23: #{tpu_custom_call.1} parent=11 // pred_region
          _
        $region24: #{tpu_custom_call.1} parent=11 // pred_fallthru
          _
        // Predicated region
        $region25: #{tpu_custom_call.1} parent=11 // pred_check
          %p367 = pneg %p168
        $region26: #{tpu_custom_call.1} parent=11 // pred_check_branch
          %369 = sbr.rel (%p367) target = $region28
        $region27: #{tpu_custom_call.1} parent=11 // pred_region
          _
        $region28: #{tpu_custom_call.1} parent=11 // pred_fallthru
          _
        // Predicated region
        $region29: #{tpu_custom_call.1} parent=11 // pred_check
          %p370 = pneg %p189
        $region30: #{tpu_custom_call.1} parent=11 // pred_check_branch
          %372 = sbr.rel (%p370) target = $region32
        $region31: #{tpu_custom_call.1} parent=11 // pred_region
          _
        $region32: #{tpu_custom_call.1} parent=11 // pred_fallthru
          _
        // Predicated region
        $region33: #{tpu_custom_call.1} parent=11 // pred_check
          %p373 = pneg %p210
        $region34: #{tpu_custom_call.1} parent=11 // pred_check_branch
          %375 = sbr.rel (%p373) target = $region36
        $region35: #{tpu_custom_call.1} parent=11 // pred_region
          _
        $region36: #{tpu_custom_call.1} parent=11 // pred_fallthru
          _
        // Predicated region
        $region37: #{tpu_custom_call.1} parent=11 // pred_check
          %p376 = pneg %p231
        $region38: #{tpu_custom_call.1} parent=11 // pred_check_branch
          %378 = sbr.rel (%p376) target = $region40
        $region39: #{tpu_custom_call.1} parent=11 // pred_region
          _
        $region40: #{tpu_custom_call.1} parent=11 // pred_fallthru
          _
        // Predicated region
        $region41: #{tpu_custom_call.1} parent=11 // pred_check
          %p379 = pneg %p252
        $region42: #{tpu_custom_call.1} parent=11 // pred_check_branch
          %381 = sbr.rel (%p379) target = $region44
        $region43: #{tpu_custom_call.1} parent=11 // pred_region
          %383 = vsyncadd [#allocation3], 0
          %s384 = sshll.u32 %s9, 4
          %s385 = int_to_ptr.hbm [resolvable:$true] %s384
          %s386 = sshll.u32 [#allocation2], 4
          %s387 = int_to_ptr.vmem [resolvable:$true] %s386
          %392 = dma.hbm_to_vmem [thread:$0]  %s385, 1024, %s387, [#allocation3], 128, 128, 8
        $region44: #{tpu_custom_call.1} parent=11 // pred_fallthru
          _
        // Predicated region
        $region45: #{tpu_custom_call.1} parent=11 // pred_check
          %p393 = pneg %p273
        $region46: #{tpu_custom_call.1} parent=11 // pred_check_branch
          %395 = sbr.rel (%p393) target = $region48
        $region47: #{tpu_custom_call.1} parent=11 // pred_region
          _
        $region48: #{tpu_custom_call.1} parent=11 // pred_fallthru
          _
        // Predicated region
        $region49: #{tpu_custom_call.1} parent=11 // pred_check
          %p396 = pneg %p294
        $region50: #{tpu_custom_call.1} parent=11 // pred_check_branch
          %398 = sbr.rel (%p396) target = $region52
        $region51: #{tpu_custom_call.1} parent=11 // pred_region
          _
        $region52: #{tpu_custom_call.1} parent=11 // pred_fallthru
          _
        // Predicated region
        $region53: #{tpu_custom_call.1} parent=11 // pred_check
          %p399 = pneg %p315
        $region54: #{tpu_custom_call.1} parent=11 // pred_check_branch
          %401 = sbr.rel (%p399) target = $region56
        $region55: #{tpu_custom_call.1} parent=11 // pred_region
          _
        $region56: #{tpu_custom_call.1} parent=11 // pred_fallthru
          _
      $region12: #{tpu_custom_call.1} parent=5 // pred_fallthru
        _
      %p402 = scmp.lt.s32.totalorder %s20, 4
      // Predicated region
      $region57: #{tpu_custom_call.1} parent=5 // pred_check
        %p403 = pneg %p402
      $region58: #{tpu_custom_call.1} parent=5 // pred_check_branch
        %405 = sbr.rel (%p403) target = $region60
      $region59: #{tpu_custom_call.1} parent=5 // pred_region
        // Predicated region
        $region61: #{tpu_custom_call.1} parent=59 // pred_check
          %p406 = pneg %p52
        $region62: #{tpu_custom_call.1} parent=59 // pred_check_branch
          %408 = sbr.rel (%p406) target = $region64
        $region63: #{tpu_custom_call.1} parent=59 // pred_region
          %p409 = scmp.lt.s32.totalorder %s27, 1
          %s410 = scalar_select %p409, %s27, 1
          %s411 = smul.addr %s410, 3
          %s412 = smul.addr %s411, 8
          %s413 = scalar_lea.vmem %s0, %s412
        $region64: #{tpu_custom_call.1} parent=59 // pred_fallthru
          _
        // Predicated region
        $region65: #{tpu_custom_call.1} parent=59 // pred_check
          %p414 = pneg %p78
        $region66: #{tpu_custom_call.1} parent=59 // pred_check_branch
          %416 = sbr.rel (%p414) target = $region68
        $region67: #{tpu_custom_call.1} parent=59 // pred_region
          %p417 = scmp.lt.s32.totalorder %s27, 1
          %s418 = scalar_select %p417, %s27, 1
          %s419 = smul.addr %s418, 3
          %s420 = smul.addr %s419, 8
          %s421 = scalar_lea.vmem %s1, %s420
        $region68: #{tpu_custom_call.1} parent=59 // pred_fallthru
          _
      $region60: #{tpu_custom_call.1} parent=5 // pred_fallthru
        _
      %p422 = scmp.le.s32.totalorder 1, %s20
      %p423 = scmp.lt.s32.totalorder %s20, 5
      %p424 = pnand %p422, %p423
      %p425 = pneg %p424
      // Predicated region
      $region69: #{tpu_custom_call.1} parent=5 // pred_check
        _
      $region70: #{tpu_custom_call.1} parent=5 // pred_check_branch
        %427 = sbr.rel (%p424) target = $region72
      $region71: #{tpu_custom_call.1} parent=5 // pred_region
        %s428 = ssub.s32 %s20, 1
        // Predicated region
        $region73: #{tpu_custom_call.1} parent=71 // pred_check
          %p429 = pneg %p252
        $region74: #{tpu_custom_call.1} parent=71 // pred_check_branch
          %431 = sbr.rel (%p429) target = $region76
        $region75: #{tpu_custom_call.1} parent=71 // pred_region
          %433 = dma.done [#allocation3], 1024
        $region76: #{tpu_custom_call.1} parent=71 // pred_fallthru
          _
        %p434 = scmp.lt.s32.totalorder %s29, 1
        %s435 = scalar_select %p434, %s29, 1
        %s436 = smul.addr %s435, 3
        %s437 = smul.addr %s436, 8
        %s438 = scalar_lea.vmem %s0, %s437
        %p439 = pneg %p58
        %p440 = pneg %p55
        %p441 = scmp.lt.s32.totalorder %s29, 1
        %s442 = scalar_select %p441, %s29, 1
        %s443 = smul.addr %s442, 3
        %s444 = smul.addr %s443, 8
        %s445 = scalar_lea.vmem %s1, %s444
        %p446 = pneg %p84
        %p447 = pneg %p81
        %p448 = pneg %p105
        %p449 = pneg %p102
        %p450 = pneg %p126
        %p451 = pneg %p123
        %p452 = pneg %p147
        %p453 = pneg %p144
        %p454 = pneg %p168
        %p455 = pneg %p165
        %p456 = pneg %p189
        %p457 = pneg %p186
        %p458 = pneg %p210
        %p459 = pneg %p207
        %p460 = pneg %p231
        %p461 = pneg %p228
        %p462 = pneg %p252
        %p463 = pneg %p249
        %p464 = pneg %p273
        %p465 = pneg %p270
        %p466 = pneg %p294
        %p467 = pneg %p291
        %p468 = pneg %p315
        %p469 = pneg %p312
        %p470 = pneg %p343
        %p471 = pneg %p340
        %p472 = scmp.lt.s32.totalorder %s29, 1
        %s473 = scalar_select %p472, %s29, 1
        %p474 = scmp.lt.s32.totalorder %s30, 1
        %s475 = scalar_select %p474, %s30, 1
        %s476 = smul.addr %s473, 2
        %s477 = sadd.s32 %s475, %s476
        %s478 = smul.addr %s477, 8
        %s479 = scalar_lea.vmem %s13, %s478
        %p480 = scmp.lt.s32.totalorder %s29, 1
        %s481 = scalar_select %p480, %s29, 1
        %s482 = smul.addr %s481, 3
        %s483 = smul.addr %s482, 8
        %s484 = scalar_lea.vmem %s0, %s483
        %p485 = scmp.lt.s32.totalorder %s29, 1
        %s486 = scalar_select %p485, %s29, 1
        %s487 = smul.addr %s486, 3
        %s488 = smul.addr %s487, 8
        %s489 = scalar_lea.vmem %s1, %s488
        %p490 = scmp.lt.s32.totalorder %s29, 1
        %s491 = scalar_select %p490, %s29, 1
        %p492 = scmp.lt.s32.totalorder %s30, 1
        %s493 = scalar_select %p492, %s30, 1
        %s494 = smul.addr %s491, 2
        %s495 = sadd.s32 %s493, %s494
        %s496 = smul.addr %s495, 8
        %s497 = scalar_lea.vmem %s13, %s496
        %s498 = smul.u32 %s30, 8
        %s499 = scalar_lea.vmem %s484, %s498
        %v500 = vld [vmem:[%s499] sm:$0xff]
        %v501 = vld [vmem:[%s499 + $0x8] sm:$0xff]
        %s502 = scalar_lea.vmem %s489, %s498
        %v503 = vld [vmem:[%s502] sm:$0xff]
        %v504 = vld [vmem:[%s502 + $0x8] sm:$0xff]
        %506 = vset.pattern.permute.xlu0 0
        %507 = vperm.xlu0 %506, %v503
        %v508 = vpop.permute.xlu0 %507
        %511 = vset.pattern.permute.xlu0 0
        %512 = vperm.xlu0 %511, %v504
        %v513 = vpop.permute.xlu0 %512
        %v515 = vmul.f32 %v500, %v508
        %v516 = vmul.f32 %v501, %v513
        %v517 = vrot.slane %v515, 7
        %v518 = vrot.slane %v516, 7
        %v519 = vlaneseq
        %v520 = vshrl.u32 %v519, 7
        %vm521 = vcmp.lt.s32.totalorder %v520, 1
        %v522 = vsel %vm521, %v517, %v518
        %v523 = vsel %vm521, %v518, %v517
        %v524 = vld [vmem:[%s2] sm:$0xf]
        %s525 = scalar_lea.vmem %s2, 4
        %v526 = vld [vmem:[%s525] sm:$0xf]
        %vm527 = vcmask 31744
        %v529 = vsel %vm527, %v515, 0
        %v532 = vsel %vm527, %v516, 0
        %vm534 = vcmask 1043456
        %v536 = vsel %vm534, %v526, 0
        %538 = vmatpush.msra.mxu0 0.0
        %539 = vmatpush.msra.mxu0 0.0
        %540 = vmatpush.msra.mxu0 0.0
        %541 = vmatpush.msra.mxu0 0.0
        %542 = vmatpush.msra.mxu0 0.0
        %543 = vmatpush.msra.mxu0 0.0
        %544 = vmatpush.msra.mxu0 0.0
        %545 = vmatpush.msra.mxu0 0.0
        %546 = vmatpush.msra.mxu0 0.0
        %547 = vmatpush.msra.mxu0 0.0
        %548 = vmatpush.msra.mxu0 0.0
        %549 = vmatpush.msra.mxu0 0.0
        %550 = vmatpush.msra.mxu0 0.0
        %551 = vmatpush.msra.mxu0 0.0
        %552 = vmatpush.msra.mxu0 0.0
        %553 = vmatpush.msra.mxu0 %v536
        %554 = vmatmul.f32.gmra.mxu0 %v529
        %v555 = vpop.f32.mrf.mxu0
        %v556 = vadd.f32 0.0, %v555
        %557 = vmatmul.f32.gmra.mxu0 %v532
        %v558 = vpop.f32.mrf.mxu0
        %v559 = vadd.f32 0.0, %v558
        %560 = vdwg.mxu0
        %v562 = vsel %vm527, %v523, 0
        %v565 = vsel %vm527, %v522, 0
        %v568 = vsel %vm534, %v524, 0
        %570 = vmatpush.msra.mxu0 0.0
        %571 = vmatpush.msra.mxu0 0.0
        %572 = vmatpush.msra.mxu0 0.0
        %573 = vmatpush.msra.mxu0 0.0
        %574 = vmatpush.msra.mxu0 0.0
        %575 = vmatpush.msra.mxu0 0.0
        %576 = vmatpush.msra.mxu0 0.0
        %577 = vmatpush.msra.mxu0 0.0
        %578 = vmatpush.msra.mxu0 0.0
        %579 = vmatpush.msra.mxu0 0.0
        %580 = vmatpush.msra.mxu0 0.0
        %581 = vmatpush.msra.mxu0 0.0
        %582 = vmatpush.msra.mxu0 0.0
        %583 = vmatpush.msra.mxu0 0.0
        %584 = vmatpush.msra.mxu0 0.0
        %585 = vmatpush.msra.mxu0 %v568
        %586 = vmatmul.f32.gmra.mxu0 %v562
        %v587 = vpop.f32.mrf.mxu0
        %v588 = vadd.f32 %v556, %v587
        %589 = vmatmul.f32.gmra.mxu0 %v565
        %v590 = vpop.f32.mrf.mxu0
        %v591 = vadd.f32 %v559, %v590
        %592 = vdwg.mxu0
        %v593 = vrot.slane %v515, 1
        %v594 = vrot.slane %v516, 1
        %vm595 = vcmp.lt.s32.totalorder %v520, 7
        %v596 = vsel %vm595, %v593, %v594
        %v597 = vsel %vm595, %v594, %v593
        %s598 = scalar_lea.vmem %s2, 8
        %v599 = vld [vmem:[%s598] sm:$0xf]
        %v601 = vsel %vm527, %v596, 0
        %v604 = vsel %vm527, %v597, 0
        %v607 = vsel %vm534, %v599, 0
        %609 = vmatpush.msra.mxu0 0.0
        %610 = vmatpush.msra.mxu0 0.0
        %611 = vmatpush.msra.mxu0 0.0
        %612 = vmatpush.msra.mxu0 0.0
        %613 = vmatpush.msra.mxu0 0.0
        %614 = vmatpush.msra.mxu0 0.0
        %615 = vmatpush.msra.mxu0 0.0
        %616 = vmatpush.msra.mxu0 0.0
        %617 = vmatpush.msra.mxu0 0.0
        %618 = vmatpush.msra.mxu0 0.0
        %619 = vmatpush.msra.mxu0 0.0
        %620 = vmatpush.msra.mxu0 0.0
        %621 = vmatpush.msra.mxu0 0.0
        %622 = vmatpush.msra.mxu0 0.0
        %623 = vmatpush.msra.mxu0 0.0
        %624 = vmatpush.msra.mxu0 %v607
        %625 = vmatmul.f32.gmra.mxu0 %v601
        %v626 = vpop.f32.mrf.mxu0
        %v627 = vadd.f32 0.0, %v626
        %628 = vmatmul.f32.gmra.mxu0 %v604
        %v629 = vpop.f32.mrf.mxu0
        %v630 = vadd.f32 0.0, %v629
        %631 = vdwg.mxu0
        %v632 = vadd.f32 %v588, %v627
        %v633 = vadd.f32 %v591, %v630
        %v634 = vld [vmem:[%s4] sm:$0x1]
        %v636 = vperm.slane %v634, 0
        %v638 = vadd.f32 %v632, %v636
        %v639 = vadd.f32 %v633, %v636
        %vm640 = vcmask 261120
        %v641 = vsel %vm640, %v638, 0.0
        %642 = vadd.xlane.f32.xlu0 %v641
        %v643 = vpop.xlane.xlu0 %642
        %v644 = vsel %vm640, %v639, 0.0
        %645 = vadd.xlane.f32.xlu0 %v644
        %v646 = vpop.xlane.xlu0 %645
        %v647 = vrcp.pop 32.0
        %v648 = vmul.f32 32.0, %v647
        %v649 = vsub.f32 1.0, %v648
        %v650 = vmul.f32 %v647, %v649
        %v651 = vadd.f32 %v647, %v650
        %vm652 = vweird.f32 %v647
        %v653 = vsel %vm652, %v647, %v651
        %v654 = vmul.f32 %v643, %v653
        %v655 = vmul.f32 %v646, %v653
        %v656 = vsub.f32 %v638, %v654
        %v657 = vsub.f32 %v639, %v655
        %v658 = vmul.f32 %v656, %v656
        %v659 = vmul.f32 %v657, %v657
        %v660 = vsel %vm640, %v658, 0.0
        %661 = vadd.xlane.f32.xlu0 %v660
        %v662 = vpop.xlane.xlu0 %661
        %v663 = vsel %vm640, %v659, 0.0
        %664 = vadd.xlane.f32.xlu0 %v663
        %v665 = vpop.xlane.xlu0 %664
        %v666 = vmul.f32 %v662, %v653
        %v667 = vmul.f32 %v665, %v653
        %v668 = vadd.f32 %v666, 0.0001
        %v669 = vadd.f32 %v667, 0.0001
        %v670 = vrsqrt.pop %v668
        %v671 = vmul.f32 %v670, %v668
        %v672 = vmul.f32 %v671, %v670
        %v673 = vmul.f32 0.5, %v672
        %v674 = vsub.f32 1.5, %v673
        %v675 = vmul.f32 %v670, %v674
        %vm676 = vweird.f32 %v668
        %vm677 = vweird.f32 %v670
        %vm678 = vmor %vm676, %vm677
        %v679 = vsel %vm678, %v670, %v675
        %v680 = vrsqrt.pop %v669
        %v681 = vmul.f32 %v680, %v669
        %v682 = vmul.f32 %v681, %v680
        %v683 = vmul.f32 0.5, %v682
        %v684 = vsub.f32 1.5, %v683
        %v685 = vmul.f32 %v680, %v684
        %vm686 = vweird.f32 %v669
        %vm687 = vweird.f32 %v680
        %vm688 = vmor %vm686, %vm687
        %v689 = vsel %vm688, %v680, %v685
        %v690 = vmul.f32 %v656, %v679
        %v691 = vmul.f32 %v657, %v689
        %v692 = vld [vmem:[%s5] sm:$0x1]
        %v694 = vperm.slane %v692, 0
        %v696 = vmul.f32 %v690, %v694
        %v697 = vmul.f32 %v691, %v694
        %v698 = vld [vmem:[%s6] sm:$0x1]
        %v700 = vperm.slane %v698, 0
        %v702 = vadd.f32 %v696, %v700
        %v703 = vadd.f32 %v697, %v700
        %v704 = vmax.f32 %v702, 0.0
        %v705 = vmax.f32 %v703, 0.0
        %708 = vrot.lane.b32.xlu0 %v638, 96
        %v709 = vpop.permute.xlu0 %708
        %710 = vrot.lane.b32.xlu0 %v639, 96
        %v711 = vpop.permute.xlu0 %710
        %v714 = vsel %vm640, %v709, 0.0
        %715 = vadd.xlane.f32.xlu0 %v714
        %v716 = vpop.xlane.xlu0 %715
        %v717 = vsel %vm640, %v711, 0.0
        %718 = vadd.xlane.f32.xlu0 %v717
        %v719 = vpop.xlane.xlu0 %718
        %v720 = vmul.f32 %v716, %v653
        %v721 = vmul.f32 %v719, %v653
        %v722 = vsub.f32 %v638, %v720
        %v723 = vsub.f32 %v639, %v721
        %v724 = vmul.f32 %v722, %v722
        %v725 = vmul.f32 %v723, %v723
        %728 = vrot.lane.b32.xlu0 %v724, 96
        %v729 = vpop.permute.xlu0 %728
        %730 = vrot.lane.b32.xlu0 %v725, 96
        %v731 = vpop.permute.xlu0 %730
        %v734 = vsel %vm640, %v729, 0.0
        %735 = vadd.xlane.f32.xlu0 %v734
        %v736 = vpop.xlane.xlu0 %735
        %v737 = vsel %vm640, %v731, 0.0
        %738 = vadd.xlane.f32.xlu0 %v737
        %v739 = vpop.xlane.xlu0 %738
        %v740 = vmul.f32 %v736, %v653
        %v741 = vmul.f32 %v739, %v653
        %v742 = vadd.f32 %v740, 0.0001
        %v743 = vadd.f32 %v741, 0.0001
        %v744 = vrsqrt.pop %v742
        %v745 = vmul.f32 %v744, %v742
        %v746 = vmul.f32 %v745, %v744
        %v747 = vmul.f32 0.5, %v746
        %v748 = vsub.f32 1.5, %v747
        %v749 = vmul.f32 %v744, %v748
        %vm750 = vweird.f32 %v742
        %vm751 = vweird.f32 %v744
        %vm752 = vmor %vm750, %vm751
        %v753 = vsel %vm752, %v744, %v749
        %v754 = vrsqrt.pop %v743
        %v755 = vmul.f32 %v754, %v743
        %v756 = vmul.f32 %v755, %v754
        %v757 = vmul.f32 0.5, %v756
        %v758 = vsub.f32 1.5, %v757
        %v759 = vmul.f32 %v754, %v758
        %vm760 = vweird.f32 %v743
        %vm761 = vweird.f32 %v754
        %vm762 = vmor %vm760, %vm761
        %v763 = vsel %vm762, %v754, %v759
        %v764 = vmul.f32 %v722, %v753
        %v765 = vmul.f32 %v723, %v763
        %v766 = vld [vmem:[%s7] sm:$0x1]
        %v768 = vperm.slane %v766, 0
        %769 = vrot.lane.b32.xlu0 %v768, 32
        %v770 = vpop.permute.xlu0 %769
        %v772 = vmul.f32 %v764, %v770
        %v773 = vmul.f32 %v765, %v770
        %v774 = vld [vmem:[%s8] sm:$0x1]
        %v776 = vperm.slane %v774, 0
        %777 = vrot.lane.b32.xlu0 %v776, 32
        %v778 = vpop.permute.xlu0 %777
        %v780 = vadd.f32 %v772, %v778
        %v781 = vadd.f32 %v773, %v778
        %v782 = vmax.f32 %v780, 0.0
        %v783 = vmax.f32 %v781, 0.0
        %v784 = vld [vmem:[#allocation2] sm:$0xff]
        %v785 = vld [vmem:[#allocation2 + $0x8] sm:$0xff]
        %v786 = vld [vmem:[#allocation2 + $0x10] sm:$0xff]
        %v787 = vld [vmem:[#allocation2 + $0x18] sm:$0xff]
        %790 = vrot.lane.b32.xlu0 %v782, 96
        %v791 = vpop.permute.xlu0 %790
        %792 = vrot.lane.b32.xlu0 %v783, 96
        %v793 = vpop.permute.xlu0 %792
        %v794 = vsel %vm640, %v791, 0
        %v796 = vsel %vm640, %v793, 0
        %798 = vmatpush.msra.mxu0 0.0
        %799 = vmatpush.msra.mxu0 0.0
        %800 = vmatpush.msra.mxu0 0.0
        %801 = vmatpush.msra.mxu0 0.0
        %802 = vmatpush.msra.mxu0 0.0
        %803 = vmatpush.msra.mxu0 0.0
        %804 = vmatpush.msra.mxu0 0.0
        %805 = vmatpush.msra.mxu0 0.0
        %806 = vmatpush.msra.mxu0 0.0
        %807 = vmatpush.msra.mxu0 0.0
        %808 = vmatpush.msra.mxu0 0.0
        %809 = vmatpush.msra.mxu0 0.0
        %810 = vmatpush.msra.mxu0 %v787
        %811 = vmatpush.msra.mxu0 %v786
        %812 = vmatpush.msra.mxu0 %v785
        %813 = vmatpush.msra.mxu0 %v784
        %814 = vmatmul.f32.gmra.mxu0 %v794
        %v815 = vpop.f32.mrf.mxu0
        %v816 = vadd.f32 0.0, %v815
        %817 = vmatmul.f32.gmra.mxu0 %v796
        %v818 = vpop.f32.mrf.mxu0
        %v819 = vadd.f32 0.0, %v818
        %820 = vdwg.mxu0
        %v821 = vadd.f32 %v704, %v816
        %v822 = vadd.f32 %v705, %v819
        %v823 = vld [vmem:[%s10] sm:$0x1]
        %v825 = vperm.slane %v823, 0
        %v827 = vadd.f32 %v821, %v825
        %v828 = vadd.f32 %v822, %v825
        %v829 = vld [vmem:[%s3] sm:$0xff]
        %v830 = vld [vmem:[%s3 + $0x8] sm:$0xff]
        %v831 = vld [vmem:[%s3 + $0x10] sm:$0xff]
        %v832 = vld [vmem:[%s3 + $0x18] sm:$0xff]
        %v833 = vld [vmem:[%s3 + $0x20] sm:$0xff]
        %v834 = vld [vmem:[%s3 + $0x28] sm:$0xff]
        %v835 = vld [vmem:[%s3 + $0x30] sm:$0xff]
        %v836 = vld [vmem:[%s3 + $0x38] sm:$0xff]
        %v837 = vld [vmem:[%s3 + $0x40] sm:$0xff]
        %v838 = vld [vmem:[%s3 + $0x48] sm:$0xff]
        %v839 = vld [vmem:[%s3 + $0x50] sm:$0xff]
        %v840 = vld [vmem:[%s3 + $0x58] sm:$0xff]
        %v841 = vmul.f32 %v827, %v508
        %v842 = vmul.f32 %v828, %v513
        %v843 = vrot.slane %v841, 7
        %v844 = vrot.slane %v842, 7
        %v845 = vsel %vm521, %v843, %v844
        %v846 = vsel %vm521, %v844, %v843
        %v848 = vsel %vm640, %v841, 0
        %v851 = vsel %vm640, %v842, 0
        %853 = vmatpush.msra.mxu0 0.0
        %854 = vmatpush.msra.mxu0 0.0
        %855 = vmatpush.msra.mxu0 0.0
        %856 = vmatpush.msra.mxu0 0.0
        %857 = vmatpush.msra.mxu0 0.0
        %858 = vmatpush.msra.mxu0 0.0
        %859 = vmatpush.msra.mxu0 0.0
        %860 = vmatpush.msra.mxu0 0.0
        %861 = vmatpush.msra.mxu0 0.0
        %862 = vmatpush.msra.mxu0 0.0
        %863 = vmatpush.msra.mxu0 0.0
        %864 = vmatpush.msra.mxu0 0.0
        %865 = vmatpush.msra.mxu0 %v836
        %866 = vmatpush.msra.mxu0 %v835
        %867 = vmatpush.msra.mxu0 %v834
        %868 = vmatpush.msra.mxu0 %v833
        %869 = vmatmul.f32.gmra.mxu0 %v848
        %v870 = vpop.f32.mrf.mxu0
        %v871 = vadd.f32 0.0, %v870
        %872 = vmatmul.f32.gmra.mxu0 %v851
        %v873 = vpop.f32.mrf.mxu0
        %v874 = vadd.f32 0.0, %v873
        %875 = vdwg.mxu0
        %v877 = vsel %vm640, %v846, 0
        %v880 = vsel %vm640, %v845, 0
        %882 = vmatpush.msra.mxu0 0.0
        %883 = vmatpush.msra.mxu0 0.0
        %884 = vmatpush.msra.mxu0 0.0
        %885 = vmatpush.msra.mxu0 0.0
        %886 = vmatpush.msra.mxu0 0.0
        %887 = vmatpush.msra.mxu0 0.0
        %888 = vmatpush.msra.mxu0 0.0
        %889 = vmatpush.msra.mxu0 0.0
        %890 = vmatpush.msra.mxu0 0.0
        %891 = vmatpush.msra.mxu0 0.0
        %892 = vmatpush.msra.mxu0 0.0
        %893 = vmatpush.msra.mxu0 0.0
        %894 = vmatpush.msra.mxu0 %v832
        %895 = vmatpush.msra.mxu0 %v831
        %896 = vmatpush.msra.mxu0 %v830
        %897 = vmatpush.msra.mxu0 %v829
        %898 = vmatmul.f32.gmra.mxu0 %v877
        %v899 = vpop.f32.mrf.mxu0
        %v900 = vadd.f32 %v871, %v899
        %901 = vmatmul.f32.gmra.mxu0 %v880
        %v902 = vpop.f32.mrf.mxu0
        %v903 = vadd.f32 %v874, %v902
        %904 = vdwg.mxu0
        %v905 = vrot.slane %v841, 1
        %v906 = vrot.slane %v842, 1
        %v907 = vsel %vm595, %v905, %v906
        %v908 = vsel %vm595, %v906, %v905
        %v910 = vsel %vm640, %v907, 0
        %v913 = vsel %vm640, %v908, 0
        %915 = vmatpush.msra.mxu0 0.0
        %916 = vmatpush.msra.mxu0 0.0
        %917 = vmatpush.msra.mxu0 0.0
        %918 = vmatpush.msra.mxu0 0.0
        %919 = vmatpush.msra.mxu0 0.0
        %920 = vmatpush.msra.mxu0 0.0
        %921 = vmatpush.msra.mxu0 0.0
        %922 = vmatpush.msra.mxu0 0.0
        %923 = vmatpush.msra.mxu0 0.0
        %924 = vmatpush.msra.mxu0 0.0
        %925 = vmatpush.msra.mxu0 0.0
        %926 = vmatpush.msra.mxu0 0.0
        %927 = vmatpush.msra.mxu0 %v840
        %928 = vmatpush.msra.mxu0 %v839
        %929 = vmatpush.msra.mxu0 %v838
        %930 = vmatpush.msra.mxu0 %v837
        %931 = vmatmul.f32.gmra.mxu0 %v910
        %v932 = vpop.f32.mrf.mxu0
        %v933 = vadd.f32 0.0, %v932
        %934 = vmatmul.f32.gmra.mxu0 %v913
        %v935 = vpop.f32.mrf.mxu0
        %v936 = vadd.f32 0.0, %v935
        %937 = vdwg.mxu0
        %v938 = vadd.f32 %v900, %v933
        %v939 = vadd.f32 %v903, %v936
        %s940 = scalar_lea.vmem %s4, 1
        %v941 = vld [vmem:[%s940] sm:$0x1]
        %v943 = vperm.slane %v941, 0
        %v945 = vadd.f32 %v938, %v943
        %v946 = vadd.f32 %v939, %v943
        %v947 = vsel %vm640, %v945, 0.0
        %948 = vadd.xlane.f32.xlu0 %v947
        %v949 = vpop.xlane.xlu0 %948
        %v950 = vsel %vm640, %v946, 0.0
        %951 = vadd.xlane.f32.xlu0 %v950
        %v952 = vpop.xlane.xlu0 %951
        %v953 = vmul.f32 %v949, %v653
        %v954 = vmul.f32 %v952, %v653
        %v955 = vsub.f32 %v945, %v953
        %v956 = vsub.f32 %v946, %v954
        %v957 = vmul.f32 %v955, %v955
        %v958 = vmul.f32 %v956, %v956
        %v959 = vsel %vm640, %v957, 0.0
        %960 = vadd.xlane.f32.xlu0 %v959
        %v961 = vpop.xlane.xlu0 %960
        %v962 = vsel %vm640, %v958, 0.0
        %963 = vadd.xlane.f32.xlu0 %v962
        %v964 = vpop.xlane.xlu0 %963
        %v965 = vmul.f32 %v961, %v653
        %v966 = vmul.f32 %v964, %v653
        %v967 = vadd.f32 %v965, 0.0001
        %v968 = vadd.f32 %v966, 0.0001
        %v969 = vrsqrt.pop %v967
        %v970 = vmul.f32 %v969, %v967
        %v971 = vmul.f32 %v970, %v969
        %v972 = vmul.f32 0.5, %v971
        %v973 = vsub.f32 1.5, %v972
        %v974 = vmul.f32 %v969, %v973
        %vm975 = vweird.f32 %v967
        %vm976 = vweird.f32 %v969
        %vm977 = vmor %vm975, %vm976
        %v978 = vsel %vm977, %v969, %v974
        %v979 = vrsqrt.pop %v968
        %v980 = vmul.f32 %v979, %v968
        %v981 = vmul.f32 %v980, %v979
        %v982 = vmul.f32 0.5, %v981
        %v983 = vsub.f32 1.5, %v982
        %v984 = vmul.f32 %v979, %v983
        %vm985 = vweird.f32 %v968
        %vm986 = vweird.f32 %v979
        %vm987 = vmor %vm985, %vm986
        %v988 = vsel %vm987, %v979, %v984
        %v989 = vmul.f32 %v955, %v978
        %v990 = vmul.f32 %v956, %v988
        %s991 = scalar_lea.vmem %s5, 1
        %v992 = vld [vmem:[%s991] sm:$0x1]
        %v994 = vperm.slane %v992, 0
        %v996 = vmul.f32 %v989, %v994
        %v997 = vmul.f32 %v990, %v994
        %s998 = scalar_lea.vmem %s6, 1
        %v999 = vld [vmem:[%s998] sm:$0x1]
        %v1001 = vperm.slane %v999, 0
        %v1003 = vadd.f32 %v996, %v1001
        %v1004 = vadd.f32 %v997, %v1001
        %v1005 = vmax.f32 %v1003, 0.0
        %v1006 = vmax.f32 %v1004, 0.0
        %1009 = vrot.lane.b32.xlu0 %v945, 96
        %v1010 = vpop.permute.xlu0 %1009
        %1011 = vrot.lane.b32.xlu0 %v946, 96
        %v1012 = vpop.permute.xlu0 %1011
        %v1015 = vsel %vm640, %v1010, 0.0
        %1016 = vadd.xlane.f32.xlu0 %v1015
        %v1017 = vpop.xlane.xlu0 %1016
        %v1018 = vsel %vm640, %v1012, 0.0
        %1019 = vadd.xlane.f32.xlu0 %v1018
        %v1020 = vpop.xlane.xlu0 %1019
        %v1021 = vmul.f32 %v1017, %v653
        %v1022 = vmul.f32 %v1020, %v653
        %v1023 = vsub.f32 %v945, %v1021
        %v1024 = vsub.f32 %v946, %v1022
        %v1025 = vmul.f32 %v1023, %v1023
        %v1026 = vmul.f32 %v1024, %v1024
        %1029 = vrot.lane.b32.xlu0 %v1025, 96
        %v1030 = vpop.permute.xlu0 %1029
        %1031 = vrot.lane.b32.xlu0 %v1026, 96
        %v1032 = vpop.permute.xlu0 %1031
        %v1035 = vsel %vm640, %v1030, 0.0
        %1036 = vadd.xlane.f32.xlu0 %v1035
        %v1037 = vpop.xlane.xlu0 %1036
        %v1038 = vsel %vm640, %v1032, 0.0
        %1039 = vadd.xlane.f32.xlu0 %v1038
        %v1040 = vpop.xlane.xlu0 %1039
        %v1041 = vmul.f32 %v1037, %v653
        %v1042 = vmul.f32 %v1040, %v653
        %v1043 = vadd.f32 %v1041, 0.0001
        %v1044 = vadd.f32 %v1042, 0.0001
        %v1045 = vrsqrt.pop %v1043
        %v1046 = vmul.f32 %v1045, %v1043
        %v1047 = vmul.f32 %v1046, %v1045
        %v1048 = vmul.f32 0.5, %v1047
        %v1049 = vsub.f32 1.5, %v1048
        %v1050 = vmul.f32 %v1045, %v1049
        %vm1051 = vweird.f32 %v1043
        %vm1052 = vweird.f32 %v1045
        %vm1053 = vmor %vm1051, %vm1052
        %v1054 = vsel %vm1053, %v1045, %v1050
        %v1055 = vrsqrt.pop %v1044
        %v1056 = vmul.f32 %v1055, %v1044
        %v1057 = vmul.f32 %v1056, %v1055
        %v1058 = vmul.f32 0.5, %v1057
        %v1059 = vsub.f32 1.5, %v1058
        %v1060 = vmul.f32 %v1055, %v1059
        %vm1061 = vweird.f32 %v1044
        %vm1062 = vweird.f32 %v1055
        %vm1063 = vmor %vm1061, %vm1062
        %v1064 = vsel %vm1063, %v1055, %v1060
        %v1065 = vmul.f32 %v1023, %v1054
        %v1066 = vmul.f32 %v1024, %v1064
        %s1067 = scalar_lea.vmem %s7, 1
        %v1068 = vld [vmem:[%s1067] sm:$0x1]
        %v1070 = vperm.slane %v1068, 0
        %1071 = vrot.lane.b32.xlu0 %v1070, 32
        %v1072 = vpop.permute.xlu0 %1071
        %v1074 = vmul.f32 %v1065, %v1072
        %v1075 = vmul.f32 %v1066, %v1072
        %s1076 = scalar_lea.vmem %s8, 1
        %v1077 = vld [vmem:[%s1076] sm:$0x1]
        %v1079 = vperm.slane %v1077, 0
        %1080 = vrot.lane.b32.xlu0 %v1079, 32
        %v1081 = vpop.permute.xlu0 %1080
        %v1083 = vadd.f32 %v1074, %v1081
        %v1084 = vadd.f32 %v1075, %v1081
        %v1085 = vmax.f32 %v1083, 0.0
        %v1086 = vmax.f32 %v1084, 0.0
        %s1087 = scalar_lea.vmem [#allocation2], 32
        %v1088 = vld [vmem:[%s1087] sm:$0xff]
        %v1089 = vld [vmem:[%s1087 + $0x8] sm:$0xff]
        %v1090 = vld [vmem:[%s1087 + $0x10] sm:$0xff]
        %v1091 = vld [vmem:[%s1087 + $0x18] sm:$0xff]
        %1094 = vrot.lane.b32.xlu0 %v1085, 96
        %v1095 = vpop.permute.xlu0 %1094
        %1096 = vrot.lane.b32.xlu0 %v1086, 96
        %v1097 = vpop.permute.xlu0 %1096
        %v1098 = vsel %vm640, %v1095, 0
        %v1100 = vsel %vm640, %v1097, 0
        %1102 = vmatpush.msra.mxu0 0.0
        %1103 = vmatpush.msra.mxu0 0.0
        %1104 = vmatpush.msra.mxu0 0.0
        %1105 = vmatpush.msra.mxu0 0.0
        %1106 = vmatpush.msra.mxu0 0.0
        %1107 = vmatpush.msra.mxu0 0.0
        %1108 = vmatpush.msra.mxu0 0.0
        %1109 = vmatpush.msra.mxu0 0.0
        %1110 = vmatpush.msra.mxu0 0.0
        %1111 = vmatpush.msra.mxu0 0.0
        %1112 = vmatpush.msra.mxu0 0.0
        %1113 = vmatpush.msra.mxu0 0.0
        %1114 = vmatpush.msra.mxu0 %v1091
        %1115 = vmatpush.msra.mxu0 %v1090
        %1116 = vmatpush.msra.mxu0 %v1089
        %1117 = vmatpush.msra.mxu0 %v1088
        %1118 = vmatmul.f32.gmra.mxu0 %v1098
        %v1119 = vpop.f32.mrf.mxu0
        %v1120 = vadd.f32 0.0, %v1119
        %1121 = vmatmul.f32.gmra.mxu0 %v1100
        %v1122 = vpop.f32.mrf.mxu0
        %v1123 = vadd.f32 0.0, %v1122
        %1124 = vdwg.mxu0
        %v1125 = vadd.f32 %v1005, %v1120
        %v1126 = vadd.f32 %v1006, %v1123
        %s1127 = scalar_lea.vmem %s10, 1
        %v1128 = vld [vmem:[%s1127] sm:$0x1]
        %v1130 = vperm.slane %v1128, 0
        %v1132 = vadd.f32 %v1125, %v1130
        %v1133 = vadd.f32 %v1126, %v1130
        %v1134 = vld [vmem:[%s11] sm:$0xff]
        %v1135 = vld [vmem:[%s11 + $0x8] sm:$0xff]
        %v1136 = vld [vmem:[%s11 + $0x10] sm:$0xff]
        %v1137 = vld [vmem:[%s11 + $0x18] sm:$0xff]
        %v1138 = vld [vmem:[%s12] sm:$0x1]
        %v1140 = vperm.slane %v1138, 0
        %vm1144 = vcmask 1045504
        %v1145 = vrot.slane %v1132, 2
        %v1146 = vrot.slane %v1133, 2
        %v1147 = vsel %vm1144, %v1145, %v1146
        %v1148 = vsel %vm640, %v1147, 0
        %1150 = vmatpush.msra.mxu0 0.0
        %1151 = vmatpush.msra.mxu0 0.0
        %1152 = vmatpush.msra.mxu0 0.0
        %1153 = vmatpush.msra.mxu0 0.0
        %1154 = vmatpush.msra.mxu0 0.0
        %1155 = vmatpush.msra.mxu0 0.0
        %1156 = vmatpush.msra.mxu0 0.0
        %1157 = vmatpush.msra.mxu0 0.0
        %1158 = vmatpush.msra.mxu0 0.0
        %1159 = vmatpush.msra.mxu0 0.0
        %1160 = vmatpush.msra.mxu0 0.0
        %1161 = vmatpush.msra.mxu0 0.0
        %1162 = vmatpush.msra.mxu0 %v1137
        %1163 = vmatpush.msra.mxu0 %v1136
        %1164 = vmatpush.msra.mxu0 %v1135
        %1165 = vmatpush.msra.mxu0 %v1134
        %1166 = vmatmul.f32.gmra.mxu0 %v1148
        %v1167 = vpop.f32.mrf.mxu0
        %v1168 = vadd.f32 %v1140, %v1167
        %1169 = vdwg.mxu0
        %v1171 = vrot.slane %v1168, 6
        %v1173 = vadd.f32 %v500, %v1171
        %v1174 = vadd.f32 %v501, %v1171
        %v1175 = vmul.f32 %v1173, %v508
        %v1176 = vmul.f32 %v1174, %v513
        %vm1177 = vcmask 31746
        %1178 = vst.msk [vmem:[%s497 - $0x2] sm:$0xfc] %vm1177, %v1175
        %vm1179 = vcmask 25600
        %1180 = vst.msk [vmem:[%s497 + $0x6] sm:$0x3] %vm1179, %v1176
        %p1181 = scmp.lt.s32.totalorder %s29, 1
        %s1182 = scalar_select %p1181, %s29, 1
        %p1183 = scmp.lt.s32.totalorder %s30, 1
        %s1184 = scalar_select %p1183, %s30, 1
        %s1185 = smul.addr %s1182, 2
        %s1186 = sadd.s32 %s1184, %s1185
        %s1187 = smul.addr %s1186, 8
        %s1188 = scalar_lea.vmem %s13, %s1187
        // Predicated region
        $region77: #{tpu_custom_call.1} parent=71 // pred_check
          %p1189 = pneg %p340
        $region78: #{tpu_custom_call.1} parent=71 // pred_check_branch
          %1191 = sbr.rel (%p1189) target = $region80
        $region79: #{tpu_custom_call.1} parent=71 // pred_region
          _
        $region80: #{tpu_custom_call.1} parent=71 // pred_fallthru
          _
      $region72: #{tpu_custom_call.1} parent=5 // pred_fallthru
        _
      %p1192 = scmp.le.s32.totalorder 2, %s20
      // Predicated region
      $region81: #{tpu_custom_call.1} parent=5 // pred_check
        %p1193 = pneg %p1192
      $region82: #{tpu_custom_call.1} parent=5 // pred_check_branch
        %1195 = sbr.rel (%p1193) target = $region84
      $region83: #{tpu_custom_call.1} parent=5 // pred_region
        %s1196 = ssub.s32 %s20, 2
        // Predicated region
        $region85: #{tpu_custom_call.1} parent=83 // pred_check
          %p1197 = pneg %p346
        $region86: #{tpu_custom_call.1} parent=83 // pred_check_branch
          %1199 = sbr.rel (%p1197) target = $region88
        $region87: #{tpu_custom_call.1} parent=83 // pred_region
          %p1200 = scmp.lt.s32.totalorder %s31, 1
          %s1201 = scalar_select %p1200, %s31, 1
          %p1202 = scmp.lt.s32.totalorder %s32, 1
          %s1203 = scalar_select %p1202, %s32, 1
          %s1204 = smul.addr %s1201, 2
          %s1205 = sadd.s32 %s1203, %s1204
          %s1206 = smul.addr %s1205, 8
          %s1207 = scalar_lea.vmem %s13, %s1206
        $region88: #{tpu_custom_call.1} parent=83 // pred_fallthru
          _
      $region84: #{tpu_custom_call.1} parent=5 // pred_fallthru
        _
    $region6: #{tpu_custom_call.1} parent=1 // loop_footer
      %s24 = sadd.s32 1, %s20
    $region7: #{tpu_custom_call.1} parent=1 // loop_footer_branch
      %19 = sbr.rel target = $region3
    $region8: #{tpu_custom_call.1} parent=1 // loop_exit
      _
    %1208 = vsyncpa [#allocation3], 1
    %s1209 = scalar_lea.sflag [#allocation3], 1
    %1210 = vsyncpa %s1209, 1

</llo_original>
